<compile_context>
chip_gen: v7x
topology: tpu7x:2x2x1
jax: 0.10.0
libtpu: 0.0.40
codegen_flags: <defaults>
</compile_context>

<pallas_src>
import functools

import jax
import jax.numpy as jnp
import numpy as np
from jax.experimental import pallas as pl
from jax.experimental.pallas import tpu as pltpu

_LANE = 128


def _round_up(x, m):
    return ((x + m - 1) // m) * m


def _tpu_budget():
    """(vmem_limit_bytes, pixel-tile cap) sized per TPU generation."""
    try:
        vmem = getattr(pltpu.get_tpu_info(), "vmem_capacity_bytes", None)
    except Exception:
        vmem = None
    if vmem is None or vmem <= 80 * 1024 * 1024:       # v7x-class (64 MiB) or unknown
        return 48 * 1024 * 1024, 2048
    return 96 * 1024 * 1024, 4096                       # v5e / v6e (128 MiB VMEM)


def _pick_spatial_tile(s2, cap):
    """Largest multiple of 128 dividing s2 (<= cap), else the full extent."""
    best = None
    t = _LANE
    while t <= min(cap, s2):
        if s2 % t == 0:
            best = t
        t += _LANE
    # TODO(synk): spatial extents with no 128-multiple divisor fall back to a
    # whole-image tile; very large such images would need a masked ragged tile.
    return best if best is not None else s2


def _pick_row_tile(h, w, cap_pixels):
    """Largest th dividing h with th*w a multiple of 128 (<= cap), else full h."""
    best = None
    for th in range(1, h + 1):
        if h % th or th * w > cap_pixels:
            continue
        if (th * w) % _LANE == 0:
            best = th
    return best if best is not None else h


# ----------------------------- Pallas kernels ------------------------------ #

def _tconv_relu_stats_kernel(a_ref, w_ref, b_ref, o_ref, ps_ref, pq_ref, *, cdt):
    """ConvTranspose2d(k=2,s=2) on one NCHW row-tile: two transposed-LHS matmuls
    (one per output-row parity `di`) against the grid-resident weight, + bias +
    ReLU + per-channel partial sum / sum-of-squares (f32)."""
    a = a_ref[0].astype(cdt)                                  # (Cup, tpix)
    th, wdim, co2 = o_ref.shape[1], o_ref.shape[3], o_ref.shape[4]
    s_acc = jnp.zeros((1, co2), jnp.float32)
    q_acc = jnp.zeros((1, co2), jnp.float32)
    for di in range(2):                                       # both matmuls per A fetch
        r = jax.lax.dot_general(a, w_ref[di], (((0,), (0,)), ((), ())),
                                preferred_element_type=jnp.float32)
        r = jnp.maximum(r + b_ref[...], 0.0)                  # (tpix, 2*CU)
        o_ref[0, :, di, :, :] = r.reshape(th, wdim, co2).astype(o_ref.dtype)
        s_acc = s_acc + jnp.sum(r, axis=0, keepdims=True)
        q_acc = q_acc + jnp.sum(r * r, axis=0, keepdims=True)
    ps_ref[...] = s_acc.reshape(ps_ref.shape)
    pq_ref[...] = q_acc.reshape(pq_ref.shape)


def _conv1x1_relu_stats_kernel(a_ref, w_ref, b_ref, o_ref, ps_ref, pq_ref, *, cdt):
    """1x1 Conv2d on one NCHW spatial tile (transposed-LHS matmul) + bias + ReLU +
    per-channel partial stats (f32)."""
    a = a_ref[0].astype(cdt)                                  # (Cx, tsx)
    r = jax.lax.dot_general(a, w_ref[...], (((0,), (0,)), ((), ())),
                            preferred_element_type=jnp.float32)
    r = jnp.maximum(r + b_ref[...], 0.0)                      # (tsx, CX)
    o_ref[0, :, :] = r.astype(o_ref.dtype)
    ps_ref[...] = jnp.sum(r, axis=0, keepdims=True).reshape(ps_ref.shape)
    pq_ref[...] = jnp.sum(r * r, axis=0, keepdims=True).reshape(pq_ref.shape)


def _bn_apply_concat_kernel(up_ref, x_ref, su_ref, hu_ref, sx_ref, hx_ref, o_ref,
                            *, up_out, x_out):
    """BN apply fused with channel concat + NHWC->NCHW placement.  Works in
    128-lane channel groups so only real channels are scaled / transposed and
    full groups store unmasked."""
    def half(src_ref, sc_ref, sh_ref, c_valid, out_base):
        n_groups = (c_valid + _LANE - 1) // _LANE
        for g in range(n_groups):
            c0 = g * _LANE
            nv = min(_LANE, c_valid - c0)
            y = (src_ref[0, :, c0:c0 + _LANE].astype(jnp.float32)
                 * sc_ref[:, c0:c0 + _LANE] + sh_ref[:, c0:c0 + _LANE])
            yt = y.T                                          # (128, tr)
            o_ref[0, out_base + c0:out_base + c0 + nv, :] = (
                yt[0:nv, :].astype(o_ref.dtype))
    half(up_ref, su_ref, hu_ref, up_out, 0)
    half(x_ref, sx_ref, hx_ref, x_out, up_out)


# ------------------------------ UnetBlock ---------------------------------- #

def unet_block_forward(up_p_nchw, x_p_nchw, params, *, eps=1e-5, use_bf16=True):
    """Forward pass of UnetBlock.  Inputs/outputs are NCHW (PyTorch convention)."""
    w_tr, b_tr = params["tr_conv_w"], params["tr_conv_b"]   # (Cup, up_out, 2, 2), (up_out,)
    w_x, b_x = params["x_conv_w"], params["x_conv_b"]       # (x_out, Cx, 1, 1), (x_out,)
    gamma, beta = params["bn_gamma"], params["bn_beta"]     # (n_out,), (n_out,)

    N, Cup, H, W = up_p_nchw.shape
    _, Cx, H2, W2 = x_p_nchw.shape
    up_out = w_tr.shape[1]
    x_out = w_x.shape[0]
    n_out = up_out + x_out
    assert H2 == 2 * H and W2 == 2 * W
    S2 = H2 * W2
    M = N * S2                                               # output pixels per channel

    CU = _round_up(up_out, _LANE)                            # lane-dense padded halves
    CX = _round_up(x_out, _LANE)

    vmem_limit, pix_cap = _tpu_budget()
    cdt = jnp.bfloat16 if use_bf16 else jnp.float32          # MXU input dtype
    sdt = jnp.bfloat16 if use_bf16 else jnp.float32          # intermediate slab dtype
    cparams = pltpu.CompilerParams(
        dimension_semantics=("parallel", "parallel"), vmem_limit_bytes=vmem_limit)

    # ---- pass 1: ConvTranspose2d(k=2,s=2) + bias + ReLU + BN partial stats ----
    # NCHW read directly (free reshape view); channels contracted on the sublane
    # axis.  Pixel shuffle folded into the slab layout (n, h, di, w, (dj, o)).
    a_up = up_p_nchw.reshape(N, Cup, H * W)
    wt = jnp.transpose(w_tr, (2, 0, 3, 1))                   # (di, c, dj, o)
    wt = jnp.pad(wt, ((0, 0), (0, 0), (0, 0), (0, CU - up_out)))
    w_up = wt.reshape(2, Cup, 2 * CU).astype(cdt)            # VMEM-resident weight
    b_up = jnp.tile(jnp.pad(b_tr, (0, CU - up_out)), (2,)).reshape(1, 2 * CU)
    b_up = b_up.astype(jnp.float32)

    th = _pick_row_tile(H, W, pix_cap)
    TH = H // th
    tpix = th * W

    up_call = pl.pallas_call(
        functools.partial(_tconv_relu_stats_kernel, cdt=cdt),
        out_shape=(
            jax.ShapeDtypeStruct((N, H, 2, W, 2 * CU), sdt),           # shuffled slab
            jax.ShapeDtypeStruct((N, TH, 1, 2 * CU), jnp.float32),     # partial sums
            jax.ShapeDtypeStruct((N, TH, 1, 2 * CU), jnp.float32),     # partial sum-sq
        ),
        grid_spec=pltpu.PrefetchScalarGridSpec(
            num_scalar_prefetch=0,
            grid=(N, TH),
            in_specs=[
                pl.BlockSpec((1, Cup, tpix), lambda n, i: (n, 0, i)),
                pl.BlockSpec((2, Cup, 2 * CU), lambda n, i: (0, 0, 0)),  # resident
                pl.BlockSpec((1, 2 * CU), lambda n, i: (0, 0)),          # resident
            ],
            out_specs=(
                pl.BlockSpec((1, th, 2, W, 2 * CU), lambda n, i: (n, i, 0, 0, 0)),
                pl.BlockSpec((1, 1, 1, 2 * CU), lambda n, i: (n, i, 0, 0)),
                pl.BlockSpec((1, 1, 1, 2 * CU), lambda n, i: (n, i, 0, 0)),
            ),
        ),
        compiler_params=cparams,
    )
    up_slab, ps_u, pq_u = up_call(a_up, w_up, b_up)

    # ---- pass 2: 1x1 Conv2d + bias + ReLU + BN partial stats ----
    a_x = x_p_nchw.reshape(N, Cx, S2)
    w_x_mat = jnp.pad(jnp.transpose(w_x[:, :, 0, 0], (1, 0)),
                      ((0, 0), (0, CX - x_out))).astype(cdt)
    b_x2 = jnp.pad(b_x, (0, CX - x_out)).reshape(1, CX).astype(jnp.float32)

    tsx = _pick_spatial_tile(S2, pix_cap)
    TSX = S2 // tsx

    x_call = pl.pallas_call(
        functools.partial(_conv1x1_relu_stats_kernel, cdt=cdt),
        out_shape=(
            jax.ShapeDtypeStruct((N, S2, CX), sdt),
            jax.ShapeDtypeStruct((N, TSX, 1, CX), jnp.float32),
            jax.ShapeDtypeStruct((N, TSX, 1, CX), jnp.float32),
        ),
        grid_spec=pltpu.PrefetchScalarGridSpec(
            num_scalar_prefetch=0,
            grid=(N, TSX),
            in_specs=[
                pl.BlockSpec((1, Cx, tsx), lambda n, s: (n, 0, s)),
                pl.BlockSpec((Cx, CX), lambda n, s: (0, 0)),             # resident
                pl.BlockSpec((1, CX), lambda n, s: (0, 0)),              # resident
            ],
            out_specs=(
                pl.BlockSpec((1, tsx, CX), lambda n, s: (n, s, 0)),
                pl.BlockSpec((1, 1, 1, CX), lambda n, s: (n, s, 0, 0)),
                pl.BlockSpec((1, 1, 1, CX), lambda n, s: (n, s, 0, 0)),
            ),
        ),
        compiler_params=cparams,
    )
    x_slab, ps_x, pq_x = x_call(a_x, w_x_mat, b_x2)

    # ---- BN batch statistics from the fused partial sums (tiny XLA reductions) ----
    cnt = jnp.float32(M)
    s_u = jnp.sum(ps_u.reshape(-1, 2, CU), axis=(0, 1))      # fold (n, tiles, dj)
    q_u = jnp.sum(pq_u.reshape(-1, 2, CU), axis=(0, 1))
    s_x = jnp.sum(ps_x.reshape(-1, CX), axis=0)
    q_x = jnp.sum(pq_x.reshape(-1, CX), axis=0)

    mean_u = s_u / cnt
    var_u = jnp.maximum(q_u / cnt - mean_u * mean_u, 0.0)    # clamp f32 cancellation
    mean_x = s_x / cnt
    var_x = jnp.maximum(q_x / cnt - mean_x * mean_x, 0.0)

    g_u = jnp.pad(gamma[:up_out], (0, CU - up_out))
    t_u = jnp.pad(beta[:up_out], (0, CU - up_out))
    g_x = jnp.pad(gamma[up_out:], (0, CX - x_out))
    t_x = jnp.pad(beta[up_out:], (0, CX - x_out))

    inv_u = g_u * jax.lax.rsqrt(var_u + eps)
    inv_x = g_x * jax.lax.rsqrt(var_x + eps)
    scale_u = inv_u.reshape(1, CU).astype(jnp.float32)
    shift_u = (t_u - mean_u * inv_u).reshape(1, CU).astype(jnp.float32)
    scale_x = inv_x.reshape(1, CX).astype(jnp.float32)
    shift_x = (t_x - mean_x * inv_x).reshape(1, CX).astype(jnp.float32)

    # ---- pass 3: BN apply fused with channel concat + NHWC -> NCHW placement ----
    up_view = up_slab.reshape(N, S2, CU)                     # free reshape (layout preserved)
    x_view = x_slab                                          # already (N, S2, CX)

    tr = _pick_spatial_tile(S2, pix_cap)
    TS = S2 // tr

    bn_call = pl.pallas_call(
        functools.partial(_bn_apply_concat_kernel, up_out=up_out, x_out=x_out),
        out_shape=jax.ShapeDtypeStruct((N, n_out, S2), jnp.float32),
        grid_spec=pltpu.PrefetchScalarGridSpec(
            num_scalar_prefetch=0,
            grid=(TS, N),                                    # largest parallel axis outermost
            in_specs=[
                pl.BlockSpec((1, tr, CU), lambda s, n: (n, s, 0)),
                pl.BlockSpec((1, tr, CX), lambda s, n: (n, s, 0)),
                pl.BlockSpec((1, CU), lambda s, n: (0, 0)),
                pl.BlockSpec((1, CU), lambda s, n: (0, 0)),
                pl.BlockSpec((1, CX), lambda s, n: (0, 0)),
                pl.BlockSpec((1, CX), lambda s, n: (0, 0)),
            ],
            out_specs=pl.BlockSpec((1, n_out, tr), lambda s, n: (n, 0, s)),
        ),
        compiler_params=cparams,
    )
    out = bn_call(up_view, x_view, scale_u, shift_u, scale_x, shift_x)
    # TODO(synk): nn.BatchNorm2d running_mean/running_var/num_batches_tracked buffer
    # updates are training-side state mutation, not part of the returned output.
    # TODO(synk): when up_out and x_out are both << 128, fusing both matmuls into one
    # pass writing a single slab padded once to round_up(n_out,128) would halve slab traffic.
    # TODO(synk): on v7x, fp8 A/W (per-channel scales folded into bias/BN) could halve
    # matmul-input bytes again; skipped to keep the accuracy budget simple.
    return out.reshape(N, n_out, H2, W2)


# ----------------------------- pure-JAX reference --------------------------- #

def unet_block_reference(up_p, x_p, params, eps=1e-5):
    w_tr, b_tr = params["tr_conv_w"], params["tr_conv_b"]
    w_x, b_x = params["x_conv_w"], params["x_conv_b"]
    gamma, beta = params["bn_gamma"], params["bn_beta"]

    up_nhwc = jnp.transpose(up_p, (0, 2, 3, 1))
    up = jnp.einsum("nhwc,coij->nhiwjo", up_nhwc, w_tr)
    N, H, _, W, _, Co = up.shape
    up = up.reshape(N, 2 * H, 2 * W, Co) + b_tr

    x_nhwc = jnp.transpose(x_p, (0, 2, 3, 1))
    xo = jnp.einsum("nhwc,oc->nhwo", x_nhwc, w_x[:, :, 0, 0]) + b_x

    r = jnp.maximum(jnp.concatenate([up, xo], axis=-1), 0.0)
    mean = r.mean(axis=(0, 1, 2))
    var = r.var(axis=(0, 1, 2))
    y = gamma * (r - mean) / jnp.sqrt(var + eps) + beta
    return jnp.transpose(y, (0, 3, 1, 2))


# --------------------------------- main ------------------------------------ #

if __name__ == "__main__":
    up_in, x_in, n_out = 8, 4, 8
    up_out = x_out = n_out // 2
    N, H, W = 2, 8, 8          # up_p spatial; x_p is (2H, 2W)

    key = jax.random.PRNGKey(0)
    ks = jax.random.split(key, 8)
    up_p = jax.random.normal(ks[0], (N, up_in, H, W), jnp.float32)
    x_p = jax.random.normal(ks[1], (N, x_in, 2 * H, 2 * W), jnp.float32)

    params = {
        "tr_conv_w": 0.1 * jax.random.normal(ks[2], (up_in, up_out, 2, 2), jnp.float32),
        "tr_conv_b": 0.1 * jax.random.normal(ks[3], (up_out,), jnp.float32),
        "x_conv_w": 0.1 * jax.random.normal(ks[4], (x_out, x_in, 1, 1), jnp.float32),
        "x_conv_b": 0.1 * jax.random.normal(ks[5], (x_out,), jnp.float32),
        "bn_gamma": 1.0 + 0.1 * jax.random.normal(ks[6], (n_out,), jnp.float32),
        "bn_beta": 0.1 * jax.random.normal(ks[7], (n_out,), jnp.float32),
    }

    ref = unet_block_reference(up_p, x_p, params)

    # default (perf) path: bf16 MXU inputs + bf16 intermediate slabs, f32 stats/output
    fwd = jax.jit(unet_block_forward)
    out = jax.block_until_ready(fwd(up_p, x_p, params))
    np.testing.assert_allclose(np.asarray(out), np.asarray(ref), rtol=6e-2, atol=6e-2)
    assert out.shape == (N, n_out, 2 * H, 2 * W)

    # full-precision path keeps the tight reference check
    fwd_f32 = jax.jit(functools.partial(unet_block_forward, use_bf16=False))
    out32 = jax.block_until_ready(fwd_f32(up_p, x_p, params))
    np.testing.assert_allclose(np.asarray(out32), np.asarray(ref), rtol=1e-4, atol=1e-4)

    print("KERNEL_OK")
</pallas_src>

<mosaic_0001>
module attributes {stable_mosaic.version = 11 : i64} {
  func.func @_tconv_relu_stats_kernel(%arg0: i32, %arg1: i32, %arg2: memref<1x8x64xf32, #tpu.memory_space<vmem>>, %arg3: memref<2x8x256xbf16, #tpu.memory_space<vmem>>, %arg4: memref<1x256xf32, #tpu.memory_space<vmem>>, %arg5: memref<1x8x2x8x256xbf16, #tpu.memory_space<vmem>>, %arg6: memref<1x1x1x256xf32, #tpu.memory_space<vmem>>, %arg7: memref<1x1x1x256xf32, #tpu.memory_space<vmem>>) attributes {dimension_semantics = [#tpu.dimension_semantics<parallel>, #tpu.dimension_semantics<parallel>], iteration_bounds = array<i64: 2, 1>, scalar_prefetch = 0 : i64, scratch_operands = 0 : i64, tpu.core_type = #tpu.core_type<tc>, window_params = [{transform_indices = @transform_0, window_bounds = array<i64: 1, 8, 64>}, {pipeline_mode = #tpu.pipeline_mode<synchronous>, transform_indices = @transform_1, window_bounds = array<i64: 2, 8, 256>}, {pipeline_mode = #tpu.pipeline_mode<synchronous>, transform_indices = @transform_2, window_bounds = array<i64: 1, 256>}, {transform_indices = @transform_3, window_bounds = array<i64: 1, 8, 2, 8, 256>}, {transform_indices = @transform_4, window_bounds = array<i64: 1, 1, 1, 256>}, {transform_indices = @transform_5, window_bounds = array<i64: 1, 1, 1, 256>}]} {
    %c0 = arith.constant 0 : index
    %c0_0 = arith.constant 0 : index
    %c0_1 = arith.constant 0 : index
    %0 = vector.load %arg2[%c0, %c0_0, %c0_1] : memref<1x8x64xf32, #tpu.memory_space<vmem>>, vector<1x8x64xf32>
    %1 = vector.shape_cast %0 : vector<1x8x64xf32> to vector<8x64xf32>
    %2 = arith.truncf %1 : vector<8x64xf32> to vector<8x64xbf16>
    %cst = arith.constant 0.000000e+00 : f32
    %3 = vector.broadcast %cst : f32 to vector<1x256xf32>
    %cst_2 = arith.constant 0.000000e+00 : f32
    %4 = vector.broadcast %cst_2 : f32 to vector<1x256xf32>
    %c0_3 = arith.constant 0 : index
    %c0_4 = arith.constant 0 : index
    %c0_5 = arith.constant 0 : index
    %5 = vector.load %arg3[%c0_3, %c0_4, %c0_5] : memref<2x8x256xbf16, #tpu.memory_space<vmem>>, vector<1x8x256xbf16>
    %6 = vector.shape_cast %5 : vector<1x8x256xbf16> to vector<8x256xbf16>
    %cst_6 = arith.constant dense<0.000000e+00> : vector<64x256xf32>
    %7 = tpu.matmul %2, %6, %cst_6 {dimension_numbers = #tpu.dot_dimension_numbers<[0], [0], [1], [1], [0, 1, 1, 1], [], []>} : vector<8x64xbf16>, vector<8x256xbf16>, vector<64x256xf32> -> vector<64x256xf32>
    %c0_7 = arith.constant 0 : index
    %c0_8 = arith.constant 0 : index
    %8 = vector.load %arg4[%c0_7, %c0_8] : memref<1x256xf32, #tpu.memory_space<vmem>>, vector<1x256xf32>
    %9 = vector.broadcast %8 : vector<1x256xf32> to vector<64x256xf32>
    %10 = arith.addf %7, %9 : vector<64x256xf32>
    %cst_9 = arith.constant 0.000000e+00 : f32
    %11 = vector.broadcast %cst_9 : f32 to vector<64x256xf32>
    %12 = arith.maximumf %10, %11 : vector<64x256xf32>
    %13 = vector.shape_cast %12 : vector<64x256xf32> to vector<8x8x256xf32>
    %14 = arith.truncf %13 : vector<8x8x256xf32> to vector<8x8x256xbf16>
    %c0_10 = arith.constant 0 : index
    %c0_11 = arith.constant 0 : index
    %c0_12 = arith.constant 0 : index
    %c0_13 = arith.constant 0 : index
    %c0_14 = arith.constant 0 : index
    %15 = vector.load %arg5[%c0_10, %c0_11, %c0_12, %c0_13, %c0_14] : memref<1x8x2x8x256xbf16, #tpu.memory_space<vmem>>, vector<1x8x1x8x256xbf16>
    %16 = vector.shape_cast %15 : vector<1x8x1x8x256xbf16> to vector<8x8x256xbf16>
    %17 = vector.shape_cast %14 : vector<8x8x256xbf16> to vector<1x8x1x8x256xbf16>
    tpu.vector_store %arg5[%c0_10, %c0_11, %c0_12, %c0_13, %c0_14], %17 {strides = array<i32>} : memref<1x8x2x8x256xbf16, #tpu.memory_space<vmem>>, vector<1x8x1x8x256xbf16>,
    %cst_15 = arith.constant dense<0.000000e+00> : vector<256xf32>
    %18 = vector.multi_reduction <add>, %12, %cst_15 [0] : vector<64x256xf32> to vector<256xf32>
    %19 = vector.shape_cast %18 : vector<256xf32> to vector<1x256xf32>
    %20 = arith.addf %3, %19 : vector<1x256xf32>
    %21 = arith.mulf %12, %12 : vector<64x256xf32>
    %cst_16 = arith.constant dense<0.000000e+00> : vector<256xf32>
    %22 = vector.multi_reduction <add>, %21, %cst_16 [0] : vector<64x256xf32> to vector<256xf32>
    %23 = vector.shape_cast %22 : vector<256xf32> to vector<1x256xf32>
    %24 = arith.addf %4, %23 : vector<1x256xf32>
    %c1 = arith.constant 1 : index
    %c0_17 = arith.constant 0 : index
    %c0_18 = arith.constant 0 : index
    %25 = vector.load %arg3[%c1, %c0_17, %c0_18] : memref<2x8x256xbf16, #tpu.memory_space<vmem>>, vector<1x8x256xbf16>
    %26 = vector.shape_cast %25 : vector<1x8x256xbf16> to vector<8x256xbf16>
    %cst_19 = arith.constant dense<0.000000e+00> : vector<64x256xf32>
    %27 = tpu.matmul %2, %26, %cst_19 {dimension_numbers = #tpu.dot_dimension_numbers<[0], [0], [1], [1], [0, 1, 1, 1], [], []>} : vector<8x64xbf16>, vector<8x256xbf16>, vector<64x256xf32> -> vector<64x256xf32>
    %c0_20 = arith.constant 0 : index
    %c0_21 = arith.constant 0 : index
    %28 = vector.load %arg4[%c0_20, %c0_21] : memref<1x256xf32, #tpu.memory_space<vmem>>, vector<1x256xf32>
    %29 = vector.broadcast %28 : vector<1x256xf32> to vector<64x256xf32>
    %30 = arith.addf %27, %29 : vector<64x256xf32>
    %cst_22 = arith.constant 0.000000e+00 : f32
    %31 = vector.broadcast %cst_22 : f32 to vector<64x256xf32>
    %32 = arith.maximumf %30, %31 : vector<64x256xf32>
    %33 = vector.shape_cast %32 : vector<64x256xf32> to vector<8x8x256xf32>
    %34 = arith.truncf %33 : vector<8x8x256xf32> to vector<8x8x256xbf16>
    %c0_23 = arith.constant 0 : index
    %c0_24 = arith.constant 0 : index
    %c1_25 = arith.constant 1 : index
    %c0_26 = arith.constant 0 : index
    %c0_27 = arith.constant 0 : index
    %35 = vector.load %arg5[%c0_23, %c0_24, %c1_25, %c0_26, %c0_27] : memref<1x8x2x8x256xbf16, #tpu.memory_space<vmem>>, vector<1x8x1x8x256xbf16>
    %36 = vector.shape_cast %35 : vector<1x8x1x8x256xbf16> to vector<8x8x256xbf16>
    %37 = vector.shape_cast %34 : vector<8x8x256xbf16> to vector<1x8x1x8x256xbf16>
    tpu.vector_store %arg5[%c0_23, %c0_24, %c1_25, %c0_26, %c0_27], %37 {strides = array<i32>} : memref<1x8x2x8x256xbf16, #tpu.memory_space<vmem>>, vector<1x8x1x8x256xbf16>,
    %cst_28 = arith.constant dense<0.000000e+00> : vector<256xf32>
    %38 = vector.multi_reduction <add>, %32, %cst_28 [0] : vector<64x256xf32> to vector<256xf32>
    %39 = vector.shape_cast %38 : vector<256xf32> to vector<1x256xf32>
    %40 = arith.addf %20, %39 : vector<1x256xf32>
    %41 = arith.mulf %32, %32 : vector<64x256xf32>
    %cst_29 = arith.constant dense<0.000000e+00> : vector<256xf32>
    %42 = vector.multi_reduction <add>, %41, %cst_29 [0] : vector<64x256xf32> to vector<256xf32>
    %43 = vector.shape_cast %42 : vector<256xf32> to vector<1x256xf32>
    %44 = arith.addf %24, %43 : vector<1x256xf32>
    %45 = vector.shape_cast %40 : vector<1x256xf32> to vector<1x1x1x256xf32>
    %c0_30 = arith.constant 0 : index
    %c0_31 = arith.constant 0 : index
    %c0_32 = arith.constant 0 : index
    %c0_33 = arith.constant 0 : index
    %46 = vector.load %arg6[%c0_30, %c0_31, %c0_32, %c0_33] : memref<1x1x1x256xf32, #tpu.memory_space<vmem>>, vector<1x1x1x256xf32>
    tpu.vector_store %arg6[%c0_30, %c0_31, %c0_32, %c0_33], %45 {strides = array<i32>} : memref<1x1x1x256xf32, #tpu.memory_space<vmem>>, vector<1x1x1x256xf32>,
    %47 = vector.shape_cast %44 : vector<1x256xf32> to vector<1x1x1x256xf32>
    %c0_34 = arith.constant 0 : index
    %c0_35 = arith.constant 0 : index
    %c0_36 = arith.constant 0 : index
    %c0_37 = arith.constant 0 : index
    %48 = vector.load %arg7[%c0_34, %c0_35, %c0_36, %c0_37] : memref<1x1x1x256xf32, #tpu.memory_space<vmem>>, vector<1x1x1x256xf32>
    tpu.vector_store %arg7[%c0_34, %c0_35, %c0_36, %c0_37], %47 {strides = array<i32>} : memref<1x1x1x256xf32, #tpu.memory_space<vmem>>, vector<1x1x1x256xf32>,
    return
  }
  func.func @transform_0(%arg0: i32, %arg1: i32) -> (i32, i32, i32) {
    %c0_i32 = arith.constant 0 : i32
    %c0_i32_0 = arith.constant 0 : i32
    return %arg0, %c0_i32, %arg1 : i32, i32, i32
  }
  func.func @transform_1(%arg0: i32, %arg1: i32) -> (i32, i32, i32) {
    %c0_i32 = arith.constant 0 : i32
    %c0_i32_0 = arith.constant 0 : i32
    %c0_i32_1 = arith.constant 0 : i32
    %c0_i32_2 = arith.constant 0 : i32
    return %c0_i32, %c0_i32_0, %c0_i32_1 : i32, i32, i32
  }
  func.func @transform_2(%arg0: i32, %arg1: i32) -> (i32, i32) {
    %c0_i32 = arith.constant 0 : i32
    %c0_i32_0 = arith.constant 0 : i32
    %c0_i32_1 = arith.constant 0 : i32
    return %c0_i32, %c0_i32_0 : i32, i32
  }
  func.func @transform_3(%arg0: i32, %arg1: i32) -> (i32, i32, i32, i32, i32) {
    %c0_i32 = arith.constant 0 : i32
    %c0_i32_0 = arith.constant 0 : i32
    %c0_i32_1 = arith.constant 0 : i32
    %c0_i32_2 = arith.constant 0 : i32
    return %arg0, %arg1, %c0_i32, %c0_i32_0, %c0_i32_1 : i32, i32, i32, i32, i32
  }
  func.func @transform_4(%arg0: i32, %arg1: i32) -> (i32, i32, i32, i32) {
    %c0_i32 = arith.constant 0 : i32
    %c0_i32_0 = arith.constant 0 : i32
    %c0_i32_1 = arith.constant 0 : i32
    return %arg0, %arg1, %c0_i32, %c0_i32_0 : i32, i32, i32, i32
  }
  func.func @transform_5(%arg0: i32, %arg1: i32) -> (i32, i32, i32, i32) {
    %c0_i32 = arith.constant 0 : i32
    %c0_i32_0 = arith.constant 0 : i32
    %c0_i32_1 = arith.constant 0 : i32
    return %arg0, %arg1, %c0_i32, %c0_i32_0 : i32, i32, i32, i32
  }
}

module attributes {stable_mosaic.version = 11 : i64} {
  func.func @_conv1x1_relu_stats_kernel(%arg0: i32, %arg1: i32, %arg2: memref<1x4x256xf32, #tpu.memory_space<vmem>>, %arg3: memref<4x128xbf16, #tpu.memory_space<vmem>>, %arg4: memref<1x128xf32, #tpu.memory_space<vmem>>, %arg5: memref<1x256x128xbf16, #tpu.memory_space<vmem>>, %arg6: memref<1x1x1x128xf32, #tpu.memory_space<vmem>>, %arg7: memref<1x1x1x128xf32, #tpu.memory_space<vmem>>) attributes {dimension_semantics = [#tpu.dimension_semantics<parallel>, #tpu.dimension_semantics<parallel>], iteration_bounds = array<i64: 2, 1>, scalar_prefetch = 0 : i64, scratch_operands = 0 : i64, tpu.core_type = #tpu.core_type<tc>, window_params = [{transform_indices = @transform_0, window_bounds = array<i64: 1, 4, 256>}, {pipeline_mode = #tpu.pipeline_mode<synchronous>, transform_indices = @transform_1, window_bounds = array<i64: 4, 128>}, {pipeline_mode = #tpu.pipeline_mode<synchronous>, transform_indices = @transform_2, window_bounds = array<i64: 1, 128>}, {transform_indices = @transform_3, window_bounds = array<i64: 1, 256, 128>}, {transform_indices = @transform_4, window_bounds = array<i64: 1, 1, 1, 128>}, {transform_indices = @transform_5, window_bounds = array<i64: 1, 1, 1, 128>}]} {
    %c0 = arith.constant 0 : index
    %c0_0 = arith.constant 0 : index
    %c0_1 = arith.constant 0 : index
    %0 = vector.load %arg2[%c0, %c0_0, %c0_1] : memref<1x4x256xf32, #tpu.memory_space<vmem>>, vector<1x4x256xf32>
    %1 = vector.shape_cast %0 : vector<1x4x256xf32> to vector<4x256xf32>
    %2 = arith.truncf %1 : vector<4x256xf32> to vector<4x256xbf16>
    %c0_2 = arith.constant 0 : index
    %c0_3 = arith.constant 0 : index
    %3 = vector.load %arg3[%c0_2, %c0_3] : memref<4x128xbf16, #tpu.memory_space<vmem>>, vector<4x128xbf16>
    %cst = arith.constant dense<0.000000e+00> : vector<256x128xf32>
    %4 = tpu.matmul %2, %3, %cst {dimension_numbers = #tpu.dot_dimension_numbers<[0], [0], [1], [1], [0, 1, 1, 1], [], []>} : vector<4x256xbf16>, vector<4x128xbf16>, vector<256x128xf32> -> vector<256x128xf32>
    %c0_4 = arith.constant 0 : index
    %c0_5 = arith.constant 0 : index
    %5 = vector.load %arg4[%c0_4, %c0_5] : memref<1x128xf32, #tpu.memory_space<vmem>>, vector<1x128xf32>
    %6 = vector.broadcast %5 : vector<1x128xf32> to vector<256x128xf32>
    %7 = arith.addf %4, %6 : vector<256x128xf32>
    %cst_6 = arith.constant 0.000000e+00 : f32
    %8 = vector.broadcast %cst_6 : f32 to vector<256x128xf32>
    %9 = arith.maximumf %7, %8 : vector<256x128xf32>
    %10 = arith.truncf %9 : vector<256x128xf32> to vector<256x128xbf16>
    %c0_7 = arith.constant 0 : index
    %c0_8 = arith.constant 0 : index
    %c0_9 = arith.constant 0 : index
    %11 = vector.load %arg5[%c0_7, %c0_8, %c0_9] : memref<1x256x128xbf16, #tpu.memory_space<vmem>>, vector<1x256x128xbf16>
    %12 = vector.shape_cast %11 : vector<1x256x128xbf16> to vector<256x128xbf16>
    %13 = vector.shape_cast %10 : vector<256x128xbf16> to vector<1x256x128xbf16>
    tpu.vector_store %arg5[%c0_7, %c0_8, %c0_9], %13 {strides = array<i32>} : memref<1x256x128xbf16, #tpu.memory_space<vmem>>, vector<1x256x128xbf16>,
    %cst_10 = arith.constant dense<0.000000e+00> : vector<128xf32>
    %14 = vector.multi_reduction <add>, %9, %cst_10 [0] : vector<256x128xf32> to vector<128xf32>
    %15 = vector.shape_cast %14 : vector<128xf32> to vector<1x128xf32>
    %16 = vector.shape_cast %15 : vector<1x128xf32> to vector<1x1x1x128xf32>
    %c0_11 = arith.constant 0 : index
    %c0_12 = arith.constant 0 : index
    %c0_13 = arith.constant 0 : index
    %c0_14 = arith.constant 0 : index
    %17 = vector.load %arg6[%c0_11, %c0_12, %c0_13, %c0_14] : memref<1x1x1x128xf32, #tpu.memory_space<vmem>>, vector<1x1x1x128xf32>
    tpu.vector_store %arg6[%c0_11, %c0_12, %c0_13, %c0_14], %16 {strides = array<i32>} : memref<1x1x1x128xf32, #tpu.memory_space<vmem>>, vector<1x1x1x128xf32>,
    %18 = arith.mulf %9, %9 : vector<256x128xf32>
    %cst_15 = arith.constant dense<0.000000e+00> : vector<128xf32>
    %19 = vector.multi_reduction <add>, %18, %cst_15 [0] : vector<256x128xf32> to vector<128xf32>
    %20 = vector.shape_cast %19 : vector<128xf32> to vector<1x128xf32>
    %21 = vector.shape_cast %20 : vector<1x128xf32> to vector<1x1x1x128xf32>
    %c0_16 = arith.constant 0 : index
    %c0_17 = arith.constant 0 : index
    %c0_18 = arith.constant 0 : index
    %c0_19 = arith.constant 0 : index
    %22 = vector.load %arg7[%c0_16, %c0_17, %c0_18, %c0_19] : memref<1x1x1x128xf32, #tpu.memory_space<vmem>>, vector<1x1x1x128xf32>
    tpu.vector_store %arg7[%c0_16, %c0_17, %c0_18, %c0_19], %21 {strides = array<i32>} : memref<1x1x1x128xf32, #tpu.memory_space<vmem>>, vector<1x1x1x128xf32>,
    return
  }
  func.func @transform_0(%arg0: i32, %arg1: i32) -> (i32, i32, i32) {
    %c0_i32 = arith.constant 0 : i32
    %c0_i32_0 = arith.constant 0 : i32
    return %arg0, %c0_i32, %arg1 : i32, i32, i32
  }
  func.func @transform_1(%arg0: i32, %arg1: i32) -> (i32, i32) {
    %c0_i32 = arith.constant 0 : i32
    %c0_i32_0 = arith.constant 0 : i32
    %c0_i32_1 = arith.constant 0 : i32
    return %c0_i32, %c0_i32_0 : i32, i32
  }
  func.func @transform_2(%arg0: i32, %arg1: i32) -> (i32, i32) {
    %c0_i32 = arith.constant 0 : i32
    %c0_i32_0 = arith.constant 0 : i32
    %c0_i32_1 = arith.constant 0 : i32
    return %c0_i32, %c0_i32_0 : i32, i32
  }
  func.func @transform_3(%arg0: i32, %arg1: i32) -> (i32, i32, i32) {
    %c0_i32 = arith.constant 0 : i32
    %c0_i32_0 = arith.constant 0 : i32
    return %arg0, %arg1, %c0_i32 : i32, i32, i32
  }
  func.func @transform_4(%arg0: i32, %arg1: i32) -> (i32, i32, i32, i32) {
    %c0_i32 = arith.constant 0 : i32
    %c0_i32_0 = arith.constant 0 : i32
    %c0_i32_1 = arith.constant 0 : i32
    return %arg0, %arg1, %c0_i32, %c0_i32_0 : i32, i32, i32, i32
  }
  func.func @transform_5(%arg0: i32, %arg1: i32) -> (i32, i32, i32, i32) {
    %c0_i32 = arith.constant 0 : i32
    %c0_i32_0 = arith.constant 0 : i32
    %c0_i32_1 = arith.constant 0 : i32
    return %arg0, %arg1, %c0_i32, %c0_i32_0 : i32, i32, i32, i32
  }
}

module attributes {stable_mosaic.version = 11 : i64} {
  func.func @_bn_apply_concat_kernel(%arg0: i32, %arg1: i32, %arg2: memref<1x256x128xbf16, #tpu.memory_space<vmem>>, %arg3: memref<1x256x128xbf16, #tpu.memory_space<vmem>>, %arg4: memref<1x128xf32, #tpu.memory_space<vmem>>, %arg5: memref<1x128xf32, #tpu.memory_space<vmem>>, %arg6: memref<1x128xf32, #tpu.memory_space<vmem>>, %arg7: memref<1x128xf32, #tpu.memory_space<vmem>>, %arg8: memref<1x8x256xf32, #tpu.memory_space<vmem>>) attributes {dimension_semantics = [#tpu.dimension_semantics<parallel>, #tpu.dimension_semantics<parallel>], iteration_bounds = array<i64: 1, 2>, scalar_prefetch = 0 : i64, scratch_operands = 0 : i64, tpu.core_type = #tpu.core_type<tc>, window_params = [{transform_indices = @transform_0, window_bounds = array<i64: 1, 256, 128>}, {transform_indices = @transform_1, window_bounds = array<i64: 1, 256, 128>}, {pipeline_mode = #tpu.pipeline_mode<synchronous>, transform_indices = @transform_2, window_bounds = array<i64: 1, 128>}, {pipeline_mode = #tpu.pipeline_mode<synchronous>, transform_indices = @transform_3, window_bounds = array<i64: 1, 128>}, {pipeline_mode = #tpu.pipeline_mode<synchronous>, transform_indices = @transform_4, window_bounds = array<i64: 1, 128>}, {pipeline_mode = #tpu.pipeline_mode<synchronous>, transform_indices = @transform_5, window_bounds = array<i64: 1, 128>}, {transform_indices = @transform_6, window_bounds = array<i64: 1, 8, 256>}]} {
    %c0 = arith.constant 0 : index
    %c0_0 = arith.constant 0 : index
    %c0_1 = arith.constant 0 : index
    %0 = vector.load %arg2[%c0, %c0_0, %c0_1] : memref<1x256x128xbf16, #tpu.memory_space<vmem>>, vector<1x256x128xbf16>
    %1 = vector.shape_cast %0 : vector<1x256x128xbf16> to vector<256x128xbf16>
    %2 = arith.extf %1 : vector<256x128xbf16> to vector<256x128xf32>
    %c0_2 = arith.constant 0 : index
    %c0_3 = arith.constant 0 : index
    %3 = vector.load %arg4[%c0_2, %c0_3] : memref<1x128xf32, #tpu.memory_space<vmem>>, vector<1x128xf32>
    %4 = vector.broadcast %3 : vector<1x128xf32> to vector<256x128xf32>
    %5 = arith.mulf %2, %4 : vector<256x128xf32>
    %c0_4 = arith.constant 0 : index
    %c0_5 = arith.constant 0 : index
    %6 = vector.load %arg5[%c0_4, %c0_5] : memref<1x128xf32, #tpu.memory_space<vmem>>, vector<1x128xf32>
    %7 = vector.broadcast %6 : vector<1x128xf32> to vector<256x128xf32>
    %8 = arith.addf %5, %7 : vector<256x128xf32>
    %9 = tpu.transpose %8, [1, 0] : vector<256x128xf32> -> vector<128x256xf32>
    %10 = vector.extract_strided_slice %9 {offsets = [0, 0], sizes = [4, 256], strides = [1, 1]} : vector<128x256xf32> to vector<4x256xf32>
    %c0_6 = arith.constant 0 : index
    %c0_7 = arith.constant 0 : index
    %c0_8 = arith.constant 0 : index
    %11 = vector.load %arg8[%c0_6, %c0_7, %c0_8] : memref<1x8x256xf32, #tpu.memory_space<vmem>>, vector<1x4x256xf32>
    %12 = vector.shape_cast %11 : vector<1x4x256xf32> to vector<4x256xf32>
    %13 = vector.shape_cast %10 : vector<4x256xf32> to vector<1x4x256xf32>
    tpu.vector_store %arg8[%c0_6, %c0_7, %c0_8], %13 {strides = array<i32>} : memref<1x8x256xf32, #tpu.memory_space<vmem>>, vector<1x4x256xf32>,
    %c0_9 = arith.constant 0 : index
    %c0_10 = arith.constant 0 : index
    %c0_11 = arith.constant 0 : index
    %14 = vector.load %arg3[%c0_9, %c0_10, %c0_11] : memref<1x256x128xbf16, #tpu.memory_space<vmem>>, vector<1x256x128xbf16>
    %15 = vector.shape_cast %14 : vector<1x256x128xbf16> to vector<256x128xbf16>
    %16 = arith.extf %15 : vector<256x128xbf16> to vector<256x128xf32>
    %c0_12 = arith.constant 0 : index
    %c0_13 = arith.constant 0 : index
    %17 = vector.load %arg6[%c0_12, %c0_13] : memref<1x128xf32, #tpu.memory_space<vmem>>, vector<1x128xf32>
    %18 = vector.broadcast %17 : vector<1x128xf32> to vector<256x128xf32>
    %19 = arith.mulf %16, %18 : vector<256x128xf32>
    %c0_14 = arith.constant 0 : index
    %c0_15 = arith.constant 0 : index
    %20 = vector.load %arg7[%c0_14, %c0_15] : memref<1x128xf32, #tpu.memory_space<vmem>>, vector<1x128xf32>
    %21 = vector.broadcast %20 : vector<1x128xf32> to vector<256x128xf32>
    %22 = arith.addf %19, %21 : vector<256x128xf32>
    %23 = tpu.transpose %22, [1, 0] : vector<256x128xf32> -> vector<128x256xf32>
    %24 = vector.extract_strided_slice %23 {offsets = [0, 0], sizes = [4, 256], strides = [1, 1]} : vector<128x256xf32> to vector<4x256xf32>
    %c0_16 = arith.constant 0 : index
    %c4 = arith.constant 4 : index
    %c0_17 = arith.constant 0 : index
    %25 = vector.load %arg8[%c0_16, %c4, %c0_17] : memref<1x8x256xf32, #tpu.memory_space<vmem>>, vector<1x4x256xf32>
    %26 = vector.shape_cast %25 : vector<1x4x256xf32> to vector<4x256xf32>
    %27 = vector.shape_cast %24 : vector<4x256xf32> to vector<1x4x256xf32>
    tpu.vector_store %arg8[%c0_16, %c4, %c0_17], %27 {strides = array<i32>} : memref<1x8x256xf32, #tpu.memory_space<vmem>>, vector<1x4x256xf32>,
    return
  }
  func.func @transform_0(%arg0: i32, %arg1: i32) -> (i32, i32, i32) {
    %c0_i32 = arith.constant 0 : i32
    %c0_i32_0 = arith.constant 0 : i32
    return %arg1, %arg0, %c0_i32 : i32, i32, i32
  }
  func.func @transform_1(%arg0: i32, %arg1: i32) -> (i32, i32, i32) {
    %c0_i32 = arith.constant 0 : i32
    %c0_i32_0 = arith.constant 0 : i32
    return %arg1, %arg0, %c0_i32 : i32, i32, i32
  }
  func.func @transform_2(%arg0: i32, %arg1: i32) -> (i32, i32) {
    %c0_i32 = arith.constant 0 : i32
    %c0_i32_0 = arith.constant 0 : i32
    %c0_i32_1 = arith.constant 0 : i32
    return %c0_i32, %c0_i32_0 : i32, i32
  }
  func.func @transform_3(%arg0: i32, %arg1: i32) -> (i32, i32) {
    %c0_i32 = arith.constant 0 : i32
    %c0_i32_0 = arith.constant 0 : i32
    %c0_i32_1 = arith.constant 0 : i32
    return %c0_i32, %c0_i32_0 : i32, i32
  }
  func.func @transform_4(%arg0: i32, %arg1: i32) -> (i32, i32) {
    %c0_i32 = arith.constant 0 : i32
    %c0_i32_0 = arith.constant 0 : i32
    %c0_i32_1 = arith.constant 0 : i32
    return %c0_i32, %c0_i32_0 : i32, i32
  }
  func.func @transform_5(%arg0: i32, %arg1: i32) -> (i32, i32) {
    %c0_i32 = arith.constant 0 : i32
    %c0_i32_0 = arith.constant 0 : i32
    %c0_i32_1 = arith.constant 0 : i32
    return %c0_i32, %c0_i32_0 : i32, i32
  }
  func.func @transform_6(%arg0: i32, %arg1: i32) -> (i32, i32, i32) {
    %c0_i32 = arith.constant 0 : i32
    %c0_i32_0 = arith.constant 0 : i32
    return %arg1, %c0_i32, %arg0 : i32, i32, i32
  }
}

</mosaic_0001>

<llo_original>
// kernel: tile.8
$region0: #{tile.8}
  #allocation0 [shape = 's32[1]{0}', space=sflag, size = 0x4, scoped, tag = 'scoped memory for tile.8']
  %s0 = inlined_call_operand.vmem [shape: f32[128], index: 0, kind: input, shape index: {}]
  %s1 = inlined_call_operand.vmem [shape: f32[2,128], index: 1, kind: output, shape index: {}]
  // Predicated region
  $region2: #{tile.8} parent=0 // pred_check
    _
  $region3: #{tile.8} parent=0 // pred_check_branch
    %3 = sbr.rel (0) target = $region5
  $region4: #{tile.8} parent=0 // pred_region
    _
  $region5: #{tile.8} parent=0 // pred_fallthru
    _
  %v4 = vld [vmem:[%s0] ss:$0 sm:$0xff]
  %5 = vst [vmem:[%s1] sm:$0x3] %v4

// kernel: unet_block_forward.4
$region0: #{unet_block_forward.4}
  #allocation0 [shape = 'u32[]', space=smem, size = 0x4, offset = 0x4, fixed_abs, tag = 'smem constant byte address 0x4 - core index']
  #allocation1 [shape = 'u32[144,128]{1,0:T(1,128)}', space=vmem, size = 0x12000, scoped, tag = 'internal scratch']
  %s0 = inlined_call_operand.vmem [shape: f32[2,4,256], index: 0, kind: input, shape index: {}]
  %s1 = inlined_call_operand.vmem [shape: bf16[4,128], index: 1, kind: input, shape index: {}]
  %s2 = inlined_call_operand.vmem [shape: f32[1,128], index: 2, kind: input, shape index: {}]
  %s3 = inlined_call_operand.vmem [shape: bf16[2,256,128], index: 3, kind: output, shape index: {0}]
  %s4 = inlined_call_operand.vmem [shape: f32[2,1,1,128], index: 4, kind: output, shape index: {1}]
  %s5 = inlined_call_operand.vmem [shape: f32[2,1,1,128], index: 5, kind: output, shape index: {2}]
  %6 = xla_tuple %s3, %s4, %s5
  %s7 = sld [smem:[#allocation0]]
  $region61: #{unet_block_forward.4} parent=0
    _
  %s9 = ssub.s32 1, %s7
  %s10 = scalar_select 0, %s9, %s7
  loop: start=0, step=1, limit=4
  $region2: #{unet_block_forward.4} parent=0 // loop_pre_header
    _
  $region3: #{unet_block_forward.4} parent=0 // loop_header
    %s12 = sphi 0, %s16
    %p13 = scmp.ge.s32.totalorder %s12, 4
    %s19 = sphi 0, %s31
    %s20 = sphi 0, %s27
    %s21 = sphi 0, %s19
    %s22 = sphi 0, %s20
    %s23 = sphi 0, %s21
    %s24 = sphi 0, %s22
    %s36 = sphi 0, %s38
    %s39 = sphi 0, %s36
    %s40 = sphi 0, %s39
    %s56 = sphi 0, %s40
    %s60 = sphi 0, %s60
    %s62 = sphi 0, %s60
    %s63 = sphi 0, %s62
    %s77 = sphi 0, %s63
    %s81 = sphi 0, %s81
    %s83 = sphi 0, %s81
    %s84 = sphi 0, %s83
    %s98 = sphi 0, %s84
    %s106 = sphi 0, %s108
    %s109 = sphi 0, %s106
    %s110 = sphi 0, %s109
    %s126 = sphi 0, %s110
    %s134 = sphi 0, %s136
    %s137 = sphi 0, %s134
    %s138 = sphi 0, %s137
    %s154 = sphi 0, %s138
    %s162 = sphi 0, %s164
    %s165 = sphi 0, %s162
    %s166 = sphi 0, %s165
    %s182 = sphi 0, %s166
  $region4: #{unet_block_forward.4} parent=0 // loop_header_branch
    %15 = sbr.rel (%p13) target = $region8
  $region5: #{unet_block_forward.4} parent=0 // loop_body
    %s17 = ssub.s32 %s12, 1
    %s18 = ssub.s32 %s12, 2
    %s25 = sadd.s32 1, %s20
    %p26 = scmp.ge.s32.totalorder %s25, 1
    %s27 = scalar_select %p26, 0, %s25
    %s28 = sadd.s32 1, %s19
    %s29 = scalar_select %p26, %s28, %s19
    %p30 = scmp.ge.s32.totalorder %s29, 2
    %s31 = scalar_select %p30, 0, %s29
    %s32 = ssub.s32 %s19, %s31
    %s33 = ssub.s32 %s20, %s27
    %s34 = sor.u32 %s32, %s33
    %p35 = scmp.eq.s32.totalorder %s34, 0
    %s37 = sadd.s32 %s36, 1
    %s38 = scalar_select %p35, %s36, %s37
    %p41 = pneg %p35
    %p42 = scmp.eq.s32.totalorder %s12, 1
    %p43 = por %p41, %p42
    %p44 = scmp.ne.s32.totalorder %s36, %s39
    %p45 = scmp.eq.s32.totalorder %s12, 0
    %p46 = por %p44, %p45
    %p47 = scmp.ne.s32.totalorder %s36, %s39
    %p48 = scmp.eq.s32.totalorder %s17, 1
    %p49 = por %p47, %p48
    %p50 = scmp.ne.s32.totalorder %s39, %s40
    %p51 = scmp.eq.s32.totalorder %s17, 0
    %p52 = por %p50, %p51
    %p53 = scmp.ne.s32.totalorder %s39, %s40
    %p54 = scmp.eq.s32.totalorder %s18, 1
    %p55 = por %p53, %p54
    %p57 = scmp.ne.s32.totalorder %s40, %s56
    %p58 = scmp.eq.s32.totalorder %s18, 0
    %p59 = por %p57, %p58
    %s61 = sadd.s32 %s60, 1
    %p64 = scmp.eq.s32.totalorder %s12, 1
    %p65 = scmp.ne.s32.totalorder %s60, %s62
    %p66 = scmp.eq.s32.totalorder %s12, 0
    %p67 = por %p65, %p66
    %p68 = scmp.ne.s32.totalorder %s60, %s62
    %p69 = scmp.eq.s32.totalorder %s17, 1
    %p70 = por %p68, %p69
    %p71 = scmp.ne.s32.totalorder %s62, %s63
    %p72 = scmp.eq.s32.totalorder %s17, 0
    %p73 = por %p71, %p72
    %p74 = scmp.ne.s32.totalorder %s62, %s63
    %p75 = scmp.eq.s32.totalorder %s18, 1
    %p76 = por %p74, %p75
    %p78 = scmp.ne.s32.totalorder %s63, %s77
    %p79 = scmp.eq.s32.totalorder %s18, 0
    %p80 = por %p78, %p79
    %s82 = sadd.s32 %s81, 1
    %p85 = scmp.eq.s32.totalorder %s12, 1
    %p86 = scmp.ne.s32.totalorder %s81, %s83
    %p87 = scmp.eq.s32.totalorder %s12, 0
    %p88 = por %p86, %p87
    %p89 = scmp.ne.s32.totalorder %s81, %s83
    %p90 = scmp.eq.s32.totalorder %s17, 1
    %p91 = por %p89, %p90
    %p92 = scmp.ne.s32.totalorder %s83, %s84
    %p93 = scmp.eq.s32.totalorder %s17, 0
    %p94 = por %p92, %p93
    %p95 = scmp.ne.s32.totalorder %s83, %s84
    %p96 = scmp.eq.s32.totalorder %s18, 1
    %p97 = por %p95, %p96
    %p99 = scmp.ne.s32.totalorder %s84, %s98
    %p100 = scmp.eq.s32.totalorder %s18, 0
    %p101 = por %p99, %p100
    %s102 = ssub.s32 %s19, %s31
    %s103 = ssub.s32 %s20, %s27
    %s104 = sor.u32 %s102, %s103
    %p105 = scmp.eq.s32.totalorder %s104, 0
    %s107 = sadd.s32 %s106, 1
    %s108 = scalar_select %p105, %s106, %s107
    %p111 = pneg %p105
    %p112 = scmp.eq.s32.totalorder %s12, 1
    %p113 = por %p111, %p112
    %p114 = scmp.ne.s32.totalorder %s106, %s109
    %p115 = scmp.eq.s32.totalorder %s12, 0
    %p116 = por %p114, %p115
    %p117 = scmp.ne.s32.totalorder %s106, %s109
    %p118 = scmp.eq.s32.totalorder %s17, 1
    %p119 = por %p117, %p118
    %p120 = scmp.ne.s32.totalorder %s109, %s110
    %p121 = scmp.eq.s32.totalorder %s17, 0
    %p122 = por %p120, %p121
    %p123 = scmp.ne.s32.totalorder %s109, %s110
    %p124 = scmp.eq.s32.totalorder %s18, 1
    %p125 = por %p123, %p124
    %p127 = scmp.ne.s32.totalorder %s110, %s126
    %p128 = scmp.eq.s32.totalorder %s18, 0
    %p129 = por %p127, %p128
    %s130 = ssub.s32 %s19, %s31
    %s131 = ssub.s32 %s20, %s27
    %s132 = sor.u32 %s130, %s131
    %p133 = scmp.eq.s32.totalorder %s132, 0
    %s135 = sadd.s32 %s134, 1
    %s136 = scalar_select %p133, %s134, %s135
    %p139 = pneg %p133
    %p140 = scmp.eq.s32.totalorder %s12, 1
    %p141 = por %p139, %p140
    %p142 = scmp.ne.s32.totalorder %s134, %s137
    %p143 = scmp.eq.s32.totalorder %s12, 0
    %p144 = por %p142, %p143
    %p145 = scmp.ne.s32.totalorder %s134, %s137
    %p146 = scmp.eq.s32.totalorder %s17, 1
    %p147 = por %p145, %p146
    %p148 = scmp.ne.s32.totalorder %s137, %s138
    %p149 = scmp.eq.s32.totalorder %s17, 0
    %p150 = por %p148, %p149
    %p151 = scmp.ne.s32.totalorder %s137, %s138
    %p152 = scmp.eq.s32.totalorder %s18, 1
    %p153 = por %p151, %p152
    %p155 = scmp.ne.s32.totalorder %s138, %s154
    %p156 = scmp.eq.s32.totalorder %s18, 0
    %p157 = por %p155, %p156
    %s158 = ssub.s32 %s19, %s31
    %s159 = ssub.s32 %s20, %s27
    %s160 = sor.u32 %s158, %s159
    %p161 = scmp.eq.s32.totalorder %s160, 0
    %s163 = sadd.s32 %s162, 1
    %s164 = scalar_select %p161, %s162, %s163
    %p167 = pneg %p161
    %p168 = scmp.eq.s32.totalorder %s12, 1
    %p169 = por %p167, %p168
    %p170 = scmp.ne.s32.totalorder %s162, %s165
    %p171 = scmp.eq.s32.totalorder %s12, 0
    %p172 = por %p170, %p171
    %p173 = scmp.ne.s32.totalorder %s162, %s165
    %p174 = scmp.eq.s32.totalorder %s17, 1
    %p175 = por %p173, %p174
    %p176 = scmp.ne.s32.totalorder %s165, %s166
    %p177 = scmp.eq.s32.totalorder %s17, 0
    %p178 = por %p176, %p177
    %p179 = scmp.ne.s32.totalorder %s165, %s166
    %p180 = scmp.eq.s32.totalorder %s18, 1
    %p181 = por %p179, %p180
    %p183 = scmp.ne.s32.totalorder %s166, %s182
    %p184 = scmp.eq.s32.totalorder %s18, 0
    %p185 = por %p183, %p184
    %p186 = scmp.le.s32.totalorder 1, %s12
    %p187 = scmp.lt.s32.totalorder %s12, 3
    %p188 = pnand %p186, %p187
    %p189 = pneg %p188
    // Predicated region
    $region9: #{unet_block_forward.4} parent=5 // pred_check
      _
    $region10: #{unet_block_forward.4} parent=5 // pred_check_branch
      %191 = sbr.rel (%p188) target = $region12
    $region11: #{unet_block_forward.4} parent=5 // pred_region
      %s192 = ssub.s32 %s12, 1
      // Predicated region
      $region13: #{unet_block_forward.4} parent=11 // pred_check
        %p193 = pneg %p73
      $region14: #{unet_block_forward.4} parent=11 // pred_check_branch
        %195 = sbr.rel (%p193) target = $region16
      $region15: #{unet_block_forward.4} parent=11 // pred_region
        _
      $region16: #{unet_block_forward.4} parent=11 // pred_fallthru
        _
      // Predicated region
      $region17: #{unet_block_forward.4} parent=11 // pred_check
        %p196 = pneg %p94
      $region18: #{unet_block_forward.4} parent=11 // pred_check_branch
        %198 = sbr.rel (%p196) target = $region20
      $region19: #{unet_block_forward.4} parent=11 // pred_region
        _
      $region20: #{unet_block_forward.4} parent=11 // pred_fallthru
        _
    $region12: #{unet_block_forward.4} parent=5 // pred_fallthru
      _
    %p199 = scmp.lt.s32.totalorder %s12, 2
    // Predicated region
    $region21: #{unet_block_forward.4} parent=5 // pred_check
      %p200 = pneg %p199
    $region22: #{unet_block_forward.4} parent=5 // pred_check_branch
      %202 = sbr.rel (%p200) target = $region24
    $region23: #{unet_block_forward.4} parent=5 // pred_region
      // Predicated region
      $region25: #{unet_block_forward.4} parent=23 // pred_check
        %p203 = pneg %p46
      $region26: #{unet_block_forward.4} parent=23 // pred_check_branch
        %205 = sbr.rel (%p203) target = $region28
      $region27: #{unet_block_forward.4} parent=23 // pred_region
        %s206 = smul.u32 2, %s20
        %p207 = scmp.lt.s32.totalorder %s19, 1
        %s208 = scalar_select %p207, %s19, 1
        %p209 = scmp.lt.s32.totalorder %s206, 1
        %s210 = scalar_select %p209, %s206, 1
        %s211 = smul.addr %s208, 2
        %s212 = sadd.s32 %s210, %s211
        %s213 = smul.addr %s212, 4
        %s214 = scalar_lea.vmem %s0, %s213
        %s215 = smul.u32 2, %s20
      $region28: #{unet_block_forward.4} parent=23 // pred_fallthru
        _
    $region24: #{unet_block_forward.4} parent=5 // pred_fallthru
      _
    %p216 = scmp.le.s32.totalorder 1, %s12
    %p217 = scmp.lt.s32.totalorder %s12, 3
    %p218 = pnand %p216, %p217
    %p219 = pneg %p218
    // Predicated region
    $region29: #{unet_block_forward.4} parent=5 // pred_check
      _
    $region30: #{unet_block_forward.4} parent=5 // pred_check_branch
      %221 = sbr.rel (%p218) target = $region32
    $region31: #{unet_block_forward.4} parent=5 // pred_region
      %s222 = ssub.s32 %s12, 1
      %s223 = smul.u32 2, %s22
      %p224 = scmp.lt.s32.totalorder %s21, 1
      %s225 = scalar_select %p224, %s21, 1
      %p226 = scmp.lt.s32.totalorder %s223, 1
      %s227 = scalar_select %p226, %s223, 1
      %s228 = smul.addr %s225, 2
      %s229 = sadd.s32 %s227, %s228
      %s230 = smul.addr %s229, 4
      %s231 = scalar_lea.vmem %s0, %s230
      %p232 = pneg %p52
      %p233 = pneg %p49
      %p234 = pneg %p73
      %p235 = pneg %p70
      %p236 = pneg %p94
      %p237 = pneg %p91
      %p238 = pneg %p122
      %p239 = pneg %p119
      %s240 = smul.u32 32, %s22
      %p241 = scmp.lt.s32.totalorder %s21, 1
      %s242 = scalar_select %p241, %s21, 1
      %p243 = scmp.lt.s32.totalorder %s240, 31
      %s244 = scalar_select %p243, %s240, 31
      %s245 = smul.addr %s242, 32
      %s246 = sadd.s32 %s244, %s245
      %s247 = smul.addr %s246, 4
      %s248 = scalar_lea.vmem %s3, %s247
      %p249 = pneg %p150
      %p250 = pneg %p147
      %p251 = scmp.lt.s32.totalorder %s21, 1
      %s252 = scalar_select %p251, %s21, 1
      %p253 = scmp.lt.s32.totalorder %s22, 0
      %s254 = scalar_select %p253, %s22, 0
      %s255 = sadd.s32 %s254, %s252
      %s256 = scalar_lea.vmem %s4, %s255
      %p257 = pneg %p178
      %p258 = pneg %p175
      %p259 = scmp.lt.s32.totalorder %s21, 1
      %s260 = scalar_select %p259, %s21, 1
      %p261 = scmp.lt.s32.totalorder %s22, 0
      %s262 = scalar_select %p261, %s22, 0
      %s263 = sadd.s32 %s262, %s260
      %s264 = scalar_lea.vmem %s5, %s263
      %s265 = smul.u32 2, %s22
      %p266 = scmp.lt.s32.totalorder %s21, 1
      %s267 = scalar_select %p266, %s21, 1
      %p268 = scmp.lt.s32.totalorder %s265, 1
      %s269 = scalar_select %p268, %s265, 1
      %s270 = smul.addr %s267, 2
      %s271 = sadd.s32 %s269, %s270
      %s272 = smul.addr %s271, 4
      %s273 = scalar_lea.vmem %s0, %s272
      %s274 = smul.u32 2, %s22
      %s275 = smul.u32 32, %s22
      %p276 = scmp.lt.s32.totalorder %s21, 1
      %s277 = scalar_select %p276, %s21, 1
      %p278 = scmp.lt.s32.totalorder %s275, 31
      %s279 = scalar_select %p278, %s275, 31
      %s280 = smul.addr %s277, 32
      %s281 = sadd.s32 %s279, %s280
      %s282 = smul.addr %s281, 4
      %s283 = scalar_lea.vmem %s3, %s282
      %s284 = smul.u32 32, %s22
      %p285 = scmp.lt.s32.totalorder %s21, 1
      %s286 = scalar_select %p285, %s21, 1
      %p287 = scmp.lt.s32.totalorder %s22, 0
      %s288 = scalar_select %p287, %s22, 0
      %s289 = sadd.s32 %s288, %s286
      %s290 = scalar_lea.vmem %s4, %s289
      %p291 = scmp.lt.s32.totalorder %s21, 1
      %s292 = scalar_select %p291, %s21, 1
      %p293 = scmp.lt.s32.totalorder %s22, 0
      %s294 = scalar_select %p293, %s22, 0
      %s295 = sadd.s32 %s294, %s292
      %s296 = scalar_lea.vmem %s5, %s295
      %v298 = vld [vmem:[%s273] sm:$0xff]
      %v300 = vcombine.high %v298, %v298
      %v302 = vpack.c.bf16 %v298, %v298
      %v303 = vpack.c.bf16 %v300, %v300
      %v304 = vld [vmem:[%s1] sm:$0x3]
      %v305 = vld [vmem:[%s2] sm:$0x1]
      %v307 = vlaneseq
      %v308 = vshrl.u32 %v307, 7
      %v309 = vsub.s32 0, %v308
      %v310 = vrot.slane %v305, %v309
      %312 = vxpose.xlu0.c.b16.start [1/8] %v302, 128
      %313 = vxpose.xlu0.c.b16.cont [2/8] 0, 128
      %314 = vxpose.xlu0.c.b16.cont [3/8] 0, 128
      %315 = vxpose.xlu0.c.b16.cont [4/8] 0, 128
      %316 = vxpose.xlu0.c.b16.cont [5/8] 0, 128
      %317 = vxpose.xlu0.c.b16.cont [6/8] 0, 128
      %318 = vxpose.xlu0.c.b16.cont [7/8] 0, 128
      %319 = vxpose.xlu0.c.b16.end [8/8] 0, 128
      %v320 = vpop.trf.xlu0
      %v321 = vpop.trf.xlu0
      %v322 = vpop.trf.xlu0
      %v323 = vpop.trf.xlu0
      %v324 = vpop.trf.xlu0
      %v325 = vpop.trf.xlu0
      %v326 = vpop.trf.xlu0
      %v327 = vpop.trf.xlu0
      %328 = vxpose.xlu0.c.b16.start [1/8] %v303, 128
      %329 = vxpose.xlu0.c.b16.cont [2/8] 0, 128
      %330 = vxpose.xlu0.c.b16.cont [3/8] 0, 128
      %331 = vxpose.xlu0.c.b16.cont [4/8] 0, 128
      %332 = vxpose.xlu0.c.b16.cont [5/8] 0, 128
      %333 = vxpose.xlu0.c.b16.cont [6/8] 0, 128
      %334 = vxpose.xlu0.c.b16.cont [7/8] 0, 128
      %335 = vxpose.xlu0.c.b16.end [8/8] 0, 128
      %v336 = vpop.trf.xlu0
      %v337 = vpop.trf.xlu0
      %v338 = vpop.trf.xlu0
      %v339 = vpop.trf.xlu0
      %v340 = vpop.trf.xlu0
      %v341 = vpop.trf.xlu0
      %v342 = vpop.trf.xlu0
      %v343 = vpop.trf.xlu0
      %vm344 = vcmask 31744
      %v346 = vsel %vm344, %v320, 0
      %v349 = vsel %vm344, %v321, 0
      %v352 = vsel %vm344, %v322, 0
      %v355 = vsel %vm344, %v323, 0
      %v358 = vsel %vm344, %v324, 0
      %v361 = vsel %vm344, %v325, 0
      %v364 = vsel %vm344, %v326, 0
      %v367 = vsel %vm344, %v327, 0
      %v370 = vsel %vm344, %v336, 0
      %v373 = vsel %vm344, %v337, 0
      %v376 = vsel %vm344, %v338, 0
      %v379 = vsel %vm344, %v339, 0
      %v382 = vsel %vm344, %v340, 0
      %v385 = vsel %vm344, %v341, 0
      %v388 = vsel %vm344, %v342, 0
      %v391 = vsel %vm344, %v343, 0
      %vm393 = vcmask 1041408
      %v395 = vsel %vm393, %v304, 0
      %397 = vmatprep.subr.bf16.mxu0 0
      %398 = vmatpush1.bf16.msra.mxu0 %v395
      %399 = vmatprep.subr.bf16.mxu0 0
      %400 = vmatpush1.bf16.msra.mxu0 0
      %401 = vmatprep.subr.bf16.mxu0 0
      %402 = vmatpush1.bf16.msra.mxu0 0
      %403 = vmatprep.subr.bf16.mxu0 0
      %404 = vmatpush1.bf16.msra.mxu0 0
      %405 = vmatprep.subr.bf16.mxu0 0
      %406 = vmatpush1.bf16.msra.mxu0 0
      %407 = vmatprep.subr.bf16.mxu0 0
      %408 = vmatpush1.bf16.msra.mxu0 0
      %409 = vmatprep.subr.bf16.mxu0 0
      %410 = vmatpush1.bf16.msra.mxu0 0
      %411 = vmatprep.subr.bf16.mxu0 0
      %412 = vmatpush1.bf16.msra.mxu0 0
      %413 = vmatprep.subr.bf16.mxu0 0
      %414 = vmatpush1.bf16.msra.mxu0 0
      %415 = vmatprep.subr.bf16.mxu0 0
      %416 = vmatpush1.bf16.msra.mxu0 0
      %417 = vmatprep.subr.bf16.mxu0 0
      %418 = vmatpush1.bf16.msra.mxu0 0
      %419 = vmatprep.subr.bf16.mxu0 0
      %420 = vmatpush1.bf16.msra.mxu0 0
      %421 = vmatprep.subr.bf16.mxu0 0
      %422 = vmatpush1.bf16.msra.mxu0 0
      %423 = vmatprep.subr.bf16.mxu0 0
      %424 = vmatpush1.bf16.msra.mxu0 0
      %425 = vmatprep.subr.bf16.mxu0 0
      %426 = vmatpush1.bf16.msra.mxu0 0
      %427 = vmatprep.subr.bf16.mxu0 0
      %428 = vmatpush1.bf16.msra.mxu0 0
      %429 = vmatprep.mubr.bf16.mxu0 0
      %430 = vmatmul.mubr.bf16.gmra.mrb[0].mxu0 %v346
      %v431 = vpop.f32.mrb[0].mxu0
      %v432 = vadd.f32 %v310, %v431
      %v433 = vpop.f32.mrb[0].mxu0
      %v434 = vpop.f32.mrb[0].mxu0
      %v435 = vadd.f32 %v310, %v434
      %v436 = vpop.f32.mrb[0].mxu0
      %437 = vmatprep.mubr.bf16.mxu0 0
      %438 = vmatmul.mubr.bf16.gmra.mrb[0].mxu0 %v349
      %v439 = vpop.f32.mrb[0].mxu0
      %v440 = vadd.f32 %v310, %v439
      %v441 = vpop.f32.mrb[0].mxu0
      %v442 = vpop.f32.mrb[0].mxu0
      %v443 = vadd.f32 %v310, %v442
      %v444 = vpop.f32.mrb[0].mxu0
      %445 = vmatprep.mubr.bf16.mxu0 0
      %446 = vmatmul.mubr.bf16.gmra.mrb[0].mxu0 %v352
      %v447 = vpop.f32.mrb[0].mxu0
      %v448 = vadd.f32 %v310, %v447
      %v449 = vpop.f32.mrb[0].mxu0
      %v450 = vpop.f32.mrb[0].mxu0
      %v451 = vadd.f32 %v310, %v450
      %v452 = vpop.f32.mrb[0].mxu0
      %453 = vmatprep.mubr.bf16.mxu0 0
      %454 = vmatmul.mubr.bf16.gmra.mrb[0].mxu0 %v355
      %v455 = vpop.f32.mrb[0].mxu0
      %v456 = vadd.f32 %v310, %v455
      %v457 = vpop.f32.mrb[0].mxu0
      %v458 = vpop.f32.mrb[0].mxu0
      %v459 = vadd.f32 %v310, %v458
      %v460 = vpop.f32.mrb[0].mxu0
      %461 = vmatprep.mubr.bf16.mxu0 0
      %462 = vmatmul.mubr.bf16.gmra.mrb[0].mxu0 %v358
      %v463 = vpop.f32.mrb[0].mxu0
      %v464 = vadd.f32 %v310, %v463
      %v465 = vpop.f32.mrb[0].mxu0
      %v466 = vpop.f32.mrb[0].mxu0
      %v467 = vadd.f32 %v310, %v466
      %v468 = vpop.f32.mrb[0].mxu0
      %469 = vmatprep.mubr.bf16.mxu0 0
      %470 = vmatmul.mubr.bf16.gmra.mrb[0].mxu0 %v361
      %v471 = vpop.f32.mrb[0].mxu0
      %v472 = vadd.f32 %v310, %v471
      %v473 = vpop.f32.mrb[0].mxu0
      %v474 = vpop.f32.mrb[0].mxu0
      %v475 = vadd.f32 %v310, %v474
      %v476 = vpop.f32.mrb[0].mxu0
      %477 = vmatprep.mubr.bf16.mxu0 0
      %478 = vmatmul.mubr.bf16.gmra.mrb[0].mxu0 %v364
      %v479 = vpop.f32.mrb[0].mxu0
      %v480 = vadd.f32 %v310, %v479
      %v481 = vpop.f32.mrb[0].mxu0
      %v482 = vpop.f32.mrb[0].mxu0
      %v483 = vadd.f32 %v310, %v482
      %v484 = vpop.f32.mrb[0].mxu0
      %485 = vmatprep.mubr.bf16.mxu0 0
      %486 = vmatmul.mubr.bf16.gmra.mrb[0].mxu0 %v367
      %v487 = vpop.f32.mrb[0].mxu0
      %v488 = vadd.f32 %v310, %v487
      %v489 = vpop.f32.mrb[0].mxu0
      %v490 = vpop.f32.mrb[0].mxu0
      %v491 = vadd.f32 %v310, %v490
      %v492 = vpop.f32.mrb[0].mxu0
      %493 = vmatprep.mubr.bf16.mxu0 0
      %494 = vmatmul.mubr.bf16.gmra.mrb[0].mxu0 %v370
      %v495 = vpop.f32.mrb[0].mxu0
      %v496 = vadd.f32 %v310, %v495
      %v497 = vpop.f32.mrb[0].mxu0
      %v498 = vpop.f32.mrb[0].mxu0
      %v499 = vadd.f32 %v310, %v498
      %v500 = vpop.f32.mrb[0].mxu0
      %501 = vmatprep.mubr.bf16.mxu0 0
      %502 = vmatmul.mubr.bf16.gmra.mrb[0].mxu0 %v373
      %v503 = vpop.f32.mrb[0].mxu0
      %v504 = vadd.f32 %v310, %v503
      %v505 = vpop.f32.mrb[0].mxu0
      %v506 = vpop.f32.mrb[0].mxu0
      %v507 = vadd.f32 %v310, %v506
      %v508 = vpop.f32.mrb[0].mxu0
      %509 = vmatprep.mubr.bf16.mxu0 0
      %510 = vmatmul.mubr.bf16.gmra.mrb[0].mxu0 %v376
      %v511 = vpop.f32.mrb[0].mxu0
      %v512 = vadd.f32 %v310, %v511
      %v513 = vpop.f32.mrb[0].mxu0
      %v514 = vpop.f32.mrb[0].mxu0
      %v515 = vadd.f32 %v310, %v514
      %v516 = vpop.f32.mrb[0].mxu0
      %517 = vmatprep.mubr.bf16.mxu0 0
      %518 = vmatmul.mubr.bf16.gmra.mrb[0].mxu0 %v379
      %v519 = vpop.f32.mrb[0].mxu0
      %v520 = vadd.f32 %v310, %v519
      %v521 = vpop.f32.mrb[0].mxu0
      %v522 = vpop.f32.mrb[0].mxu0
      %v523 = vadd.f32 %v310, %v522
      %v524 = vpop.f32.mrb[0].mxu0
      %525 = vmatprep.mubr.bf16.mxu0 0
      %526 = vmatmul.mubr.bf16.gmra.mrb[0].mxu0 %v382
      %v527 = vpop.f32.mrb[0].mxu0
      %v528 = vadd.f32 %v310, %v527
      %v529 = vpop.f32.mrb[0].mxu0
      %v530 = vpop.f32.mrb[0].mxu0
      %v531 = vadd.f32 %v310, %v530
      %v532 = vpop.f32.mrb[0].mxu0
      %533 = vmatprep.mubr.bf16.mxu0 0
      %534 = vmatmul.mubr.bf16.gmra.mrb[0].mxu0 %v385
      %v535 = vpop.f32.mrb[0].mxu0
      %v536 = vadd.f32 %v310, %v535
      %v537 = vpop.f32.mrb[0].mxu0
      %v538 = vpop.f32.mrb[0].mxu0
      %v539 = vadd.f32 %v310, %v538
      %v540 = vpop.f32.mrb[0].mxu0
      %541 = vmatprep.mubr.bf16.mxu0 0
      %542 = vmatmul.mubr.bf16.gmra.mrb[0].mxu0 %v388
      %v543 = vpop.f32.mrb[0].mxu0
      %v544 = vadd.f32 %v310, %v543
      %v545 = vpop.f32.mrb[0].mxu0
      %v546 = vpop.f32.mrb[0].mxu0
      %v547 = vadd.f32 %v310, %v546
      %v548 = vpop.f32.mrb[0].mxu0
      %549 = vmatprep.mubr.bf16.mxu0 0
      %550 = vmatmul.mubr.bf16.gmra.mrb[0].mxu0 %v391
      %v551 = vpop.f32.mrb[0].mxu0
      %v552 = vadd.f32 %v310, %v551
      %v553 = vpop.f32.mrb[0].mxu0
      %v554 = vpop.f32.mrb[0].mxu0
      %v555 = vadd.f32 %v310, %v554
      %v556 = vpop.f32.mrb[0].mxu0
      %557 = vdwg.mxu0
      %v558 = vmax.f32 %v432, 0.0
      %v559 = vmax.f32 %v435, 0.0
      %v560 = vmax.f32 %v440, 0.0
      %v561 = vmax.f32 %v443, 0.0
      %v562 = vmax.f32 %v448, 0.0
      %v563 = vmax.f32 %v451, 0.0
      %v564 = vmax.f32 %v456, 0.0
      %v565 = vmax.f32 %v459, 0.0
      %v566 = vmax.f32 %v464, 0.0
      %v567 = vmax.f32 %v467, 0.0
      %v568 = vmax.f32 %v472, 0.0
      %v569 = vmax.f32 %v475, 0.0
      %v570 = vmax.f32 %v480, 0.0
      %v571 = vmax.f32 %v483, 0.0
      %v572 = vmax.f32 %v488, 0.0
      %v573 = vmax.f32 %v491, 0.0
      %v574 = vmax.f32 %v496, 0.0
      %v575 = vmax.f32 %v499, 0.0
      %v576 = vmax.f32 %v504, 0.0
      %v577 = vmax.f32 %v507, 0.0
      %v578 = vmax.f32 %v512, 0.0
      %v579 = vmax.f32 %v515, 0.0
      %v580 = vmax.f32 %v520, 0.0
      %v581 = vmax.f32 %v523, 0.0
      %v582 = vmax.f32 %v528, 0.0
      %v583 = vmax.f32 %v531, 0.0
      %v584 = vmax.f32 %v536, 0.0
      %v585 = vmax.f32 %v539, 0.0
      %v586 = vmax.f32 %v544, 0.0
      %v587 = vmax.f32 %v547, 0.0
      %v588 = vmax.f32 %v552, 0.0
      %v589 = vmax.f32 %v555, 0.0
      %v590 = vpack.c.bf16 %v559, %v558
      %v591 = vpack.c.bf16 %v561, %v560
      %v592 = vpack.c.bf16 %v563, %v562
      %v593 = vpack.c.bf16 %v565, %v564
      %v594 = vpack.c.bf16 %v567, %v566
      %v595 = vpack.c.bf16 %v569, %v568
      %v596 = vpack.c.bf16 %v571, %v570
      %v597 = vpack.c.bf16 %v573, %v572
      %v598 = vpack.c.bf16 %v575, %v574
      %v599 = vpack.c.bf16 %v577, %v576
      %v600 = vpack.c.bf16 %v579, %v578
      %v601 = vpack.c.bf16 %v581, %v580
      %v602 = vpack.c.bf16 %v583, %v582
      %v603 = vpack.c.bf16 %v585, %v584
      %v604 = vpack.c.bf16 %v587, %v586
      %v605 = vpack.c.bf16 %v589, %v588
      %v622 = vunpack.c.l.b16 %v590
      %v623 = vunpack.c.h.b16 %v590
      %v624 = vunpack.c.l.b16 %v591
      %v625 = vunpack.c.h.b16 %v591
      %v626 = vunpack.c.l.b16 %v592
      %v627 = vunpack.c.h.b16 %v592
      %v628 = vunpack.c.l.b16 %v593
      %v629 = vunpack.c.h.b16 %v593
      %v630 = vunpack.c.l.b16 %v594
      %v631 = vunpack.c.h.b16 %v594
      %v632 = vunpack.c.l.b16 %v595
      %v633 = vunpack.c.h.b16 %v595
      %v634 = vunpack.c.l.b16 %v596
      %v635 = vunpack.c.h.b16 %v596
      %v636 = vunpack.c.l.b16 %v597
      %v637 = vunpack.c.h.b16 %v597
      %v638 = vunpack.c.l.b16 %v598
      %v639 = vunpack.c.h.b16 %v598
      %v640 = vunpack.c.l.b16 %v599
      %v641 = vunpack.c.h.b16 %v599
      %v642 = vunpack.c.l.b16 %v600
      %v643 = vunpack.c.h.b16 %v600
      %v644 = vunpack.c.l.b16 %v601
      %v645 = vunpack.c.h.b16 %v601
      %v646 = vunpack.c.l.b16 %v602
      %v647 = vunpack.c.h.b16 %v602
      %v648 = vunpack.c.l.b16 %v603
      %v649 = vunpack.c.h.b16 %v603
      %v650 = vunpack.c.l.b16 %v604
      %v651 = vunpack.c.h.b16 %v604
      %v652 = vunpack.c.l.b16 %v605
      %v653 = vunpack.c.h.b16 %v605
      %v654 = vpack.c.b16 %v622, %v622
      %v655 = vpack.c.b16 %v623, %v623
      %v656 = vpack.c.b16 %v624, %v624
      %v657 = vpack.c.b16 %v625, %v625
      %v658 = vpack.c.b16 %v626, %v626
      %v659 = vpack.c.b16 %v627, %v627
      %v660 = vpack.c.b16 %v628, %v628
      %v661 = vpack.c.b16 %v629, %v629
      %v662 = vpack.c.b16 %v630, %v630
      %v663 = vpack.c.b16 %v631, %v631
      %v664 = vpack.c.b16 %v632, %v632
      %v665 = vpack.c.b16 %v633, %v633
      %v666 = vpack.c.b16 %v634, %v634
      %v667 = vpack.c.b16 %v635, %v635
      %v668 = vpack.c.b16 %v636, %v636
      %v669 = vpack.c.b16 %v637, %v637
      %v670 = vpack.c.b16 %v638, %v638
      %v671 = vpack.c.b16 %v639, %v639
      %v672 = vpack.c.b16 %v640, %v640
      %v673 = vpack.c.b16 %v641, %v641
      %v674 = vpack.c.b16 %v642, %v642
      %v675 = vpack.c.b16 %v643, %v643
      %v676 = vpack.c.b16 %v644, %v644
      %v677 = vpack.c.b16 %v645, %v645
      %v678 = vpack.c.b16 %v646, %v646
      %v679 = vpack.c.b16 %v647, %v647
      %v680 = vpack.c.b16 %v648, %v648
      %v681 = vpack.c.b16 %v649, %v649
      %v682 = vpack.c.b16 %v650, %v650
      %v683 = vpack.c.b16 %v651, %v651
      %v684 = vpack.c.b16 %v652, %v652
      %v685 = vpack.c.b16 %v653, %v653
      %718 = vst [vmem:[%s283] sm:$0xf] %v654
      %719 = vst [vmem:[%s283 + $0x4] sm:$0xf] %v655
      %720 = vst [vmem:[%s283 + $0x8] sm:$0xf] %v656
      %721 = vst [vmem:[%s283 + $0xc] sm:$0xf] %v657
      %722 = vst [vmem:[%s283 + $0x10] sm:$0xf] %v658
      %723 = vst [vmem:[%s283 + $0x14] sm:$0xf] %v659
      %724 = vst [vmem:[%s283 + $0x18] sm:$0xf] %v660
      %725 = vst [vmem:[%s283 + $0x1c] sm:$0xf] %v661
      %726 = vst [vmem:[%s283 + $0x20] sm:$0xf] %v662
      %727 = vst [vmem:[%s283 + $0x24] sm:$0xf] %v663
      %728 = vst [vmem:[%s283 + $0x28] sm:$0xf] %v664
      %729 = vst [vmem:[%s283 + $0x2c] sm:$0xf] %v665
      %730 = vst [vmem:[%s283 + $0x30] sm:$0xf] %v666
      %731 = vst [vmem:[%s283 + $0x34] sm:$0xf] %v667
      %732 = vst [vmem:[%s283 + $0x38] sm:$0xf] %v668
      %733 = vst [vmem:[%s283 + $0x3c] sm:$0xf] %v669
      %734 = vst [vmem:[%s283 + $0x40] sm:$0xf] %v670
      %735 = vst [vmem:[%s283 + $0x44] sm:$0xf] %v671
      %736 = vst [vmem:[%s283 + $0x48] sm:$0xf] %v672
      %737 = vst [vmem:[%s283 + $0x4c] sm:$0xf] %v673
      %738 = vst [vmem:[%s283 + $0x50] sm:$0xf] %v674
      %739 = vst [vmem:[%s283 + $0x54] sm:$0xf] %v675
      %740 = vst [vmem:[%s283 + $0x58] sm:$0xf] %v676
      %741 = vst [vmem:[%s283 + $0x5c] sm:$0xf] %v677
      %742 = vst [vmem:[%s283 + $0x60] sm:$0xf] %v678
      %743 = vst [vmem:[%s283 + $0x64] sm:$0xf] %v679
      %744 = vst [vmem:[%s283 + $0x68] sm:$0xf] %v680
      %745 = vst [vmem:[%s283 + $0x6c] sm:$0xf] %v681
      %746 = vst [vmem:[%s283 + $0x70] sm:$0xf] %v682
      %747 = vst [vmem:[%s283 + $0x74] sm:$0xf] %v683
      %748 = vst [vmem:[%s283 + $0x78] sm:$0xf] %v684
      %749 = vst [vmem:[%s283 + $0x7c] sm:$0xf] %v685
      %v750 = vadd.f32 %v558, %v559
      %v751 = vadd.f32 %v750, %v560
      %v752 = vadd.f32 %v751, %v561
      %v753 = vadd.f32 %v752, %v562
      %v754 = vadd.f32 %v753, %v563
      %v755 = vadd.f32 %v754, %v564
      %v756 = vadd.f32 %v755, %v565
      %v757 = vadd.f32 %v756, %v566
      %v758 = vadd.f32 %v757, %v567
      %v759 = vadd.f32 %v758, %v568
      %v760 = vadd.f32 %v759, %v569
      %v761 = vadd.f32 %v760, %v570
      %v762 = vadd.f32 %v761, %v571
      %v763 = vadd.f32 %v762, %v572
      %v764 = vadd.f32 %v763, %v573
      %v765 = vadd.f32 %v764, %v574
      %v766 = vadd.f32 %v765, %v575
      %v767 = vadd.f32 %v766, %v576
      %v768 = vadd.f32 %v767, %v577
      %v769 = vadd.f32 %v768, %v578
      %v770 = vadd.f32 %v769, %v579
      %v771 = vadd.f32 %v770, %v580
      %v772 = vadd.f32 %v771, %v581
      %v773 = vadd.f32 %v772, %v582
      %v774 = vadd.f32 %v773, %v583
      %v775 = vadd.f32 %v774, %v584
      %v776 = vadd.f32 %v775, %v585
      %v777 = vadd.f32 %v776, %v586
      %v778 = vadd.f32 %v777, %v587
      %v779 = vadd.f32 %v778, %v588
      %v780 = vadd.f32 %v779, %v589
      %v781 = vrot.slane %v780, 4
      %v782 = vadd.f32 %v780, %v781
      %v783 = vrot.slane %v782, 2
      %v784 = vadd.f32 %v782, %v783
      %v785 = vrot.slane %v784, 1
      %v786 = vadd.f32 %v784, %v785
      %787 = vst [vmem:[%s290] sm:$0x1] %v786
      %v788 = vmul.f32 %v558, %v558
      %v789 = vmul.f32 %v559, %v559
      %v790 = vmul.f32 %v560, %v560
      %v791 = vmul.f32 %v561, %v561
      %v792 = vmul.f32 %v562, %v562
      %v793 = vmul.f32 %v563, %v563
      %v794 = vmul.f32 %v564, %v564
      %v795 = vmul.f32 %v565, %v565
      %v796 = vmul.f32 %v566, %v566
      %v797 = vmul.f32 %v567, %v567
      %v798 = vmul.f32 %v568, %v568
      %v799 = vmul.f32 %v569, %v569
      %v800 = vmul.f32 %v570, %v570
      %v801 = vmul.f32 %v571, %v571
      %v802 = vmul.f32 %v572, %v572
      %v803 = vmul.f32 %v573, %v573
      %v804 = vmul.f32 %v574, %v574
      %v805 = vmul.f32 %v575, %v575
      %v806 = vmul.f32 %v576, %v576
      %v807 = vmul.f32 %v577, %v577
      %v808 = vmul.f32 %v578, %v578
      %v809 = vmul.f32 %v579, %v579
      %v810 = vmul.f32 %v580, %v580
      %v811 = vmul.f32 %v581, %v581
      %v812 = vmul.f32 %v582, %v582
      %v813 = vmul.f32 %v583, %v583
      %v814 = vmul.f32 %v584, %v584
      %v815 = vmul.f32 %v585, %v585
      %v816 = vmul.f32 %v586, %v586
      %v817 = vmul.f32 %v587, %v587
      %v818 = vmul.f32 %v588, %v588
      %v819 = vmul.f32 %v589, %v589
      %v820 = vadd.f32 %v788, %v789
      %v821 = vadd.f32 %v820, %v790
      %v822 = vadd.f32 %v821, %v791
      %v823 = vadd.f32 %v822, %v792
      %v824 = vadd.f32 %v823, %v793
      %v825 = vadd.f32 %v824, %v794
      %v826 = vadd.f32 %v825, %v795
      %v827 = vadd.f32 %v826, %v796
      %v828 = vadd.f32 %v827, %v797
      %v829 = vadd.f32 %v828, %v798
      %v830 = vadd.f32 %v829, %v799
      %v831 = vadd.f32 %v830, %v800
      %v832 = vadd.f32 %v831, %v801
      %v833 = vadd.f32 %v832, %v802
      %v834 = vadd.f32 %v833, %v803
      %v835 = vadd.f32 %v834, %v804
      %v836 = vadd.f32 %v835, %v805
      %v837 = vadd.f32 %v836, %v806
      %v838 = vadd.f32 %v837, %v807
      %v839 = vadd.f32 %v838, %v808
      %v840 = vadd.f32 %v839, %v809
      %v841 = vadd.f32 %v840, %v810
      %v842 = vadd.f32 %v841, %v811
      %v843 = vadd.f32 %v842, %v812
      %v844 = vadd.f32 %v843, %v813
      %v845 = vadd.f32 %v844, %v814
      %v846 = vadd.f32 %v845, %v815
      %v847 = vadd.f32 %v846, %v816
      %v848 = vadd.f32 %v847, %v817
      %v849 = vadd.f32 %v848, %v818
      %v850 = vadd.f32 %v849, %v819
      %v851 = vrot.slane %v850, 4
      %v852 = vadd.f32 %v850, %v851
      %v853 = vrot.slane %v852, 2
      %v854 = vadd.f32 %v852, %v853
      %v855 = vrot.slane %v854, 1
      %v856 = vadd.f32 %v854, %v855
      %857 = vst [vmem:[%s296] sm:$0x1] %v856
      %s858 = smul.u32 32, %s22
      %p859 = scmp.lt.s32.totalorder %s21, 1
      %s860 = scalar_select %p859, %s21, 1
      %p861 = scmp.lt.s32.totalorder %s858, 31
      %s862 = scalar_select %p861, %s858, 31
      %s863 = smul.addr %s860, 32
      %s864 = sadd.s32 %s862, %s863
      %s865 = smul.addr %s864, 4
      %s866 = scalar_lea.vmem %s3, %s865
      %p867 = scmp.lt.s32.totalorder %s21, 1
      %s868 = scalar_select %p867, %s21, 1
      %p869 = scmp.lt.s32.totalorder %s22, 0
      %s870 = scalar_select %p869, %s22, 0
      %s871 = sadd.s32 %s870, %s868
      %s872 = scalar_lea.vmem %s4, %s871
      %p873 = scmp.lt.s32.totalorder %s21, 1
      %s874 = scalar_select %p873, %s21, 1
      %p875 = scmp.lt.s32.totalorder %s22, 0
      %s876 = scalar_select %p875, %s22, 0
      %s877 = sadd.s32 %s876, %s874
      %s878 = scalar_lea.vmem %s5, %s877
      // Predicated region
      $region33: #{unet_block_forward.4} parent=31 // pred_check
        %p879 = pneg %p119
      $region34: #{unet_block_forward.4} parent=31 // pred_check_branch
        %881 = sbr.rel (%p879) target = $region36
      $region35: #{unet_block_forward.4} parent=31 // pred_region
        %s882 = smul.u32 32, %s22
      $region36: #{unet_block_forward.4} parent=31 // pred_fallthru
        _
      // Predicated region
      $region37: #{unet_block_forward.4} parent=31 // pred_check
        %p883 = pneg %p147
      $region38: #{unet_block_forward.4} parent=31 // pred_check_branch
        %885 = sbr.rel (%p883) target = $region40
      $region39: #{unet_block_forward.4} parent=31 // pred_region
        _
      $region40: #{unet_block_forward.4} parent=31 // pred_fallthru
        _
      // Predicated region
      $region41: #{unet_block_forward.4} parent=31 // pred_check
        %p886 = pneg %p175
      $region42: #{unet_block_forward.4} parent=31 // pred_check_branch
        %888 = sbr.rel (%p886) target = $region44
      $region43: #{unet_block_forward.4} parent=31 // pred_region
        _
      $region44: #{unet_block_forward.4} parent=31 // pred_fallthru
        _
    $region32: #{unet_block_forward.4} parent=5 // pred_fallthru
      _
    %p889 = scmp.le.s32.totalorder 2, %s12
    // Predicated region
    $region45: #{unet_block_forward.4} parent=5 // pred_check
      %p890 = pneg %p889
    $region46: #{unet_block_forward.4} parent=5 // pred_check_branch
      %892 = sbr.rel (%p890) target = $region48
    $region47: #{unet_block_forward.4} parent=5 // pred_region
      %s893 = ssub.s32 %s12, 2
      // Predicated region
      $region49: #{unet_block_forward.4} parent=47 // pred_check
        %p894 = pneg %p125
      $region50: #{unet_block_forward.4} parent=47 // pred_check_branch
        %896 = sbr.rel (%p894) target = $region52
      $region51: #{unet_block_forward.4} parent=47 // pred_region
        %s897 = smul.u32 32, %s24
        %p898 = scmp.lt.s32.totalorder %s23, 1
        %s899 = scalar_select %p898, %s23, 1
        %p900 = scmp.lt.s32.totalorder %s897, 31
        %s901 = scalar_select %p900, %s897, 31
        %s902 = smul.addr %s899, 32
        %s903 = sadd.s32 %s901, %s902
        %s904 = smul.addr %s903, 4
        %s905 = scalar_lea.vmem %s3, %s904
      $region52: #{unet_block_forward.4} parent=47 // pred_fallthru
        _
      // Predicated region
      $region53: #{unet_block_forward.4} parent=47 // pred_check
        %p906 = pneg %p153
      $region54: #{unet_block_forward.4} parent=47 // pred_check_branch
        %908 = sbr.rel (%p906) target = $region56
      $region55: #{unet_block_forward.4} parent=47 // pred_region
        %p909 = scmp.lt.s32.totalorder %s23, 1
        %s910 = scalar_select %p909, %s23, 1
        %p911 = scmp.lt.s32.totalorder %s24, 0
        %s912 = scalar_select %p911, %s24, 0
        %s913 = sadd.s32 %s912, %s910
        %s914 = scalar_lea.vmem %s4, %s913
      $region56: #{unet_block_forward.4} parent=47 // pred_fallthru
        _
      // Predicated region
      $region57: #{unet_block_forward.4} parent=47 // pred_check
        %p915 = pneg %p181
      $region58: #{unet_block_forward.4} parent=47 // pred_check_branch
        %917 = sbr.rel (%p915) target = $region60
      $region59: #{unet_block_forward.4} parent=47 // pred_region
        %p918 = scmp.lt.s32.totalorder %s23, 1
        %s919 = scalar_select %p918, %s23, 1
        %p920 = scmp.lt.s32.totalorder %s24, 0
        %s921 = scalar_select %p920, %s24, 0
        %s922 = sadd.s32 %s921, %s919
        %s923 = scalar_lea.vmem %s5, %s922
      $region60: #{unet_block_forward.4} parent=47 // pred_fallthru
        _
    $region48: #{unet_block_forward.4} parent=5 // pred_fallthru
      _
  $region6: #{unet_block_forward.4} parent=0 // loop_footer
    %s16 = sadd.s32 1, %s12
  $region7: #{unet_block_forward.4} parent=0 // loop_footer_branch
    %11 = sbr.rel target = $region3
  $region8: #{unet_block_forward.4} parent=0 // loop_exit
    _

// kernel: unet_block_forward.3
$region0: #{unet_block_forward.3}
  #allocation0 [shape = 'u32[]', space=smem, size = 0x4, offset = 0x4, fixed_abs, tag = 'smem constant byte address 0x4 - core index']
  #allocation1 [shape = 'u32[144,128]{1,0:T(1,128)}', space=vmem, size = 0x12000, scoped, tag = 'internal scratch']
  %s0 = inlined_call_operand.vmem [shape: f32[2,8,64], index: 0, kind: input, shape index: {}]
  %s1 = inlined_call_operand.vmem [shape: bf16[2,8,256], index: 1, kind: input, shape index: {}]
  %s2 = inlined_call_operand.vmem [shape: f32[1,256], index: 2, kind: input, shape index: {}]
  %s3 = inlined_call_operand.vmem [shape: bf16[2,8,2,8,256], index: 3, kind: output, shape index: {0}]
  %s4 = inlined_call_operand.vmem [shape: f32[2,1,1,256], index: 4, kind: output, shape index: {1}]
  %s5 = inlined_call_operand.vmem [shape: f32[2,1,1,256], index: 5, kind: output, shape index: {2}]
  %6 = xla_tuple %s3, %s4, %s5
  %s7 = sld [smem:[#allocation0]]
  $region61: #{unet_block_forward.3} parent=0
    _
  %s9 = ssub.s32 1, %s7
  %s10 = scalar_select 0, %s9, %s7
  loop: start=0, step=1, limit=4
  $region2: #{unet_block_forward.3} parent=0 // loop_pre_header
    _
  $region3: #{unet_block_forward.3} parent=0 // loop_header
    %s12 = sphi 0, %s16
    %p13 = scmp.ge.s32.totalorder %s12, 4
    %s19 = sphi 0, %s31
    %s20 = sphi 0, %s27
    %s21 = sphi 0, %s19
    %s22 = sphi 0, %s20
    %s23 = sphi 0, %s21
    %s24 = sphi 0, %s22
    %s36 = sphi 0, %s38
    %s39 = sphi 0, %s36
    %s40 = sphi 0, %s39
    %s56 = sphi 0, %s40
    %s60 = sphi 0, %s60
    %s62 = sphi 0, %s60
    %s63 = sphi 0, %s62
    %s77 = sphi 0, %s63
    %s81 = sphi 0, %s81
    %s83 = sphi 0, %s81
    %s84 = sphi 0, %s83
    %s98 = sphi 0, %s84
    %s106 = sphi 0, %s108
    %s109 = sphi 0, %s106
    %s110 = sphi 0, %s109
    %s126 = sphi 0, %s110
    %s134 = sphi 0, %s136
    %s137 = sphi 0, %s134
    %s138 = sphi 0, %s137
    %s154 = sphi 0, %s138
    %s162 = sphi 0, %s164
    %s165 = sphi 0, %s162
    %s166 = sphi 0, %s165
    %s182 = sphi 0, %s166
  $region4: #{unet_block_forward.3} parent=0 // loop_header_branch
    %15 = sbr.rel (%p13) target = $region8
  $region5: #{unet_block_forward.3} parent=0 // loop_body
    %s17 = ssub.s32 %s12, 1
    %s18 = ssub.s32 %s12, 2
    %s25 = sadd.s32 1, %s20
    %p26 = scmp.ge.s32.totalorder %s25, 1
    %s27 = scalar_select %p26, 0, %s25
    %s28 = sadd.s32 1, %s19
    %s29 = scalar_select %p26, %s28, %s19
    %p30 = scmp.ge.s32.totalorder %s29, 2
    %s31 = scalar_select %p30, 0, %s29
    %s32 = ssub.s32 %s19, %s31
    %s33 = ssub.s32 %s20, %s27
    %s34 = sor.u32 %s32, %s33
    %p35 = scmp.eq.s32.totalorder %s34, 0
    %s37 = sadd.s32 %s36, 1
    %s38 = scalar_select %p35, %s36, %s37
    %p41 = pneg %p35
    %p42 = scmp.eq.s32.totalorder %s12, 1
    %p43 = por %p41, %p42
    %p44 = scmp.ne.s32.totalorder %s36, %s39
    %p45 = scmp.eq.s32.totalorder %s12, 0
    %p46 = por %p44, %p45
    %p47 = scmp.ne.s32.totalorder %s36, %s39
    %p48 = scmp.eq.s32.totalorder %s17, 1
    %p49 = por %p47, %p48
    %p50 = scmp.ne.s32.totalorder %s39, %s40
    %p51 = scmp.eq.s32.totalorder %s17, 0
    %p52 = por %p50, %p51
    %p53 = scmp.ne.s32.totalorder %s39, %s40
    %p54 = scmp.eq.s32.totalorder %s18, 1
    %p55 = por %p53, %p54
    %p57 = scmp.ne.s32.totalorder %s40, %s56
    %p58 = scmp.eq.s32.totalorder %s18, 0
    %p59 = por %p57, %p58
    %s61 = sadd.s32 %s60, 1
    %p64 = scmp.eq.s32.totalorder %s12, 1
    %p65 = scmp.ne.s32.totalorder %s60, %s62
    %p66 = scmp.eq.s32.totalorder %s12, 0
    %p67 = por %p65, %p66
    %p68 = scmp.ne.s32.totalorder %s60, %s62
    %p69 = scmp.eq.s32.totalorder %s17, 1
    %p70 = por %p68, %p69
    %p71 = scmp.ne.s32.totalorder %s62, %s63
    %p72 = scmp.eq.s32.totalorder %s17, 0
    %p73 = por %p71, %p72
    %p74 = scmp.ne.s32.totalorder %s62, %s63
    %p75 = scmp.eq.s32.totalorder %s18, 1
    %p76 = por %p74, %p75
    %p78 = scmp.ne.s32.totalorder %s63, %s77
    %p79 = scmp.eq.s32.totalorder %s18, 0
    %p80 = por %p78, %p79
    %s82 = sadd.s32 %s81, 1
    %p85 = scmp.eq.s32.totalorder %s12, 1
    %p86 = scmp.ne.s32.totalorder %s81, %s83
    %p87 = scmp.eq.s32.totalorder %s12, 0
    %p88 = por %p86, %p87
    %p89 = scmp.ne.s32.totalorder %s81, %s83
    %p90 = scmp.eq.s32.totalorder %s17, 1
    %p91 = por %p89, %p90
    %p92 = scmp.ne.s32.totalorder %s83, %s84
    %p93 = scmp.eq.s32.totalorder %s17, 0
    %p94 = por %p92, %p93
    %p95 = scmp.ne.s32.totalorder %s83, %s84
    %p96 = scmp.eq.s32.totalorder %s18, 1
    %p97 = por %p95, %p96
    %p99 = scmp.ne.s32.totalorder %s84, %s98
    %p100 = scmp.eq.s32.totalorder %s18, 0
    %p101 = por %p99, %p100
    %s102 = ssub.s32 %s19, %s31
    %s103 = ssub.s32 %s20, %s27
    %s104 = sor.u32 %s102, %s103
    %p105 = scmp.eq.s32.totalorder %s104, 0
    %s107 = sadd.s32 %s106, 1
    %s108 = scalar_select %p105, %s106, %s107
    %p111 = pneg %p105
    %p112 = scmp.eq.s32.totalorder %s12, 1
    %p113 = por %p111, %p112
    %p114 = scmp.ne.s32.totalorder %s106, %s109
    %p115 = scmp.eq.s32.totalorder %s12, 0
    %p116 = por %p114, %p115
    %p117 = scmp.ne.s32.totalorder %s106, %s109
    %p118 = scmp.eq.s32.totalorder %s17, 1
    %p119 = por %p117, %p118
    %p120 = scmp.ne.s32.totalorder %s109, %s110
    %p121 = scmp.eq.s32.totalorder %s17, 0
    %p122 = por %p120, %p121
    %p123 = scmp.ne.s32.totalorder %s109, %s110
    %p124 = scmp.eq.s32.totalorder %s18, 1
    %p125 = por %p123, %p124
    %p127 = scmp.ne.s32.totalorder %s110, %s126
    %p128 = scmp.eq.s32.totalorder %s18, 0
    %p129 = por %p127, %p128
    %s130 = ssub.s32 %s19, %s31
    %s131 = ssub.s32 %s20, %s27
    %s132 = sor.u32 %s130, %s131
    %p133 = scmp.eq.s32.totalorder %s132, 0
    %s135 = sadd.s32 %s134, 1
    %s136 = scalar_select %p133, %s134, %s135
    %p139 = pneg %p133
    %p140 = scmp.eq.s32.totalorder %s12, 1
    %p141 = por %p139, %p140
    %p142 = scmp.ne.s32.totalorder %s134, %s137
    %p143 = scmp.eq.s32.totalorder %s12, 0
    %p144 = por %p142, %p143
    %p145 = scmp.ne.s32.totalorder %s134, %s137
    %p146 = scmp.eq.s32.totalorder %s17, 1
    %p147 = por %p145, %p146
    %p148 = scmp.ne.s32.totalorder %s137, %s138
    %p149 = scmp.eq.s32.totalorder %s17, 0
    %p150 = por %p148, %p149
    %p151 = scmp.ne.s32.totalorder %s137, %s138
    %p152 = scmp.eq.s32.totalorder %s18, 1
    %p153 = por %p151, %p152
    %p155 = scmp.ne.s32.totalorder %s138, %s154
    %p156 = scmp.eq.s32.totalorder %s18, 0
    %p157 = por %p155, %p156
    %s158 = ssub.s32 %s19, %s31
    %s159 = ssub.s32 %s20, %s27
    %s160 = sor.u32 %s158, %s159
    %p161 = scmp.eq.s32.totalorder %s160, 0
    %s163 = sadd.s32 %s162, 1
    %s164 = scalar_select %p161, %s162, %s163
    %p167 = pneg %p161
    %p168 = scmp.eq.s32.totalorder %s12, 1
    %p169 = por %p167, %p168
    %p170 = scmp.ne.s32.totalorder %s162, %s165
    %p171 = scmp.eq.s32.totalorder %s12, 0
    %p172 = por %p170, %p171
    %p173 = scmp.ne.s32.totalorder %s162, %s165
    %p174 = scmp.eq.s32.totalorder %s17, 1
    %p175 = por %p173, %p174
    %p176 = scmp.ne.s32.totalorder %s165, %s166
    %p177 = scmp.eq.s32.totalorder %s17, 0
    %p178 = por %p176, %p177
    %p179 = scmp.ne.s32.totalorder %s165, %s166
    %p180 = scmp.eq.s32.totalorder %s18, 1
    %p181 = por %p179, %p180
    %p183 = scmp.ne.s32.totalorder %s166, %s182
    %p184 = scmp.eq.s32.totalorder %s18, 0
    %p185 = por %p183, %p184
    %p186 = scmp.le.s32.totalorder 1, %s12
    %p187 = scmp.lt.s32.totalorder %s12, 3
    %p188 = pnand %p186, %p187
    %p189 = pneg %p188
    // Predicated region
    $region9: #{unet_block_forward.3} parent=5 // pred_check
      _
    $region10: #{unet_block_forward.3} parent=5 // pred_check_branch
      %191 = sbr.rel (%p188) target = $region12
    $region11: #{unet_block_forward.3} parent=5 // pred_region
      %s192 = ssub.s32 %s12, 1
      // Predicated region
      $region13: #{unet_block_forward.3} parent=11 // pred_check
        %p193 = pneg %p73
      $region14: #{unet_block_forward.3} parent=11 // pred_check_branch
        %195 = sbr.rel (%p193) target = $region16
      $region15: #{unet_block_forward.3} parent=11 // pred_region
        _
      $region16: #{unet_block_forward.3} parent=11 // pred_fallthru
        _
      // Predicated region
      $region17: #{unet_block_forward.3} parent=11 // pred_check
        %p196 = pneg %p94
      $region18: #{unet_block_forward.3} parent=11 // pred_check_branch
        %198 = sbr.rel (%p196) target = $region20
      $region19: #{unet_block_forward.3} parent=11 // pred_region
        _
      $region20: #{unet_block_forward.3} parent=11 // pred_fallthru
        _
    $region12: #{unet_block_forward.3} parent=5 // pred_fallthru
      _
    %p199 = scmp.lt.s32.totalorder %s12, 2
    // Predicated region
    $region21: #{unet_block_forward.3} parent=5 // pred_check
      %p200 = pneg %p199
    $region22: #{unet_block_forward.3} parent=5 // pred_check_branch
      %202 = sbr.rel (%p200) target = $region24
    $region23: #{unet_block_forward.3} parent=5 // pred_region
      // Predicated region
      $region25: #{unet_block_forward.3} parent=23 // pred_check
        %p203 = pneg %p46
      $region26: #{unet_block_forward.3} parent=23 // pred_check_branch
        %205 = sbr.rel (%p203) target = $region28
      $region27: #{unet_block_forward.3} parent=23 // pred_region
        %p206 = scmp.lt.s32.totalorder %s19, 1
        %s207 = scalar_select %p206, %s19, 1
        %p208 = scmp.lt.s32.totalorder %s20, 0
        %s209 = scalar_select %p208, %s20, 0
        %s210 = sadd.s32 %s209, %s207
        %s211 = smul.addr %s210, 8
        %s212 = scalar_lea.vmem %s0, %s211
      $region28: #{unet_block_forward.3} parent=23 // pred_fallthru
        _
    $region24: #{unet_block_forward.3} parent=5 // pred_fallthru
      _
    %p213 = scmp.le.s32.totalorder 1, %s12
    %p214 = scmp.lt.s32.totalorder %s12, 3
    %p215 = pnand %p213, %p214
    %p216 = pneg %p215
    // Predicated region
    $region29: #{unet_block_forward.3} parent=5 // pred_check
      _
    $region30: #{unet_block_forward.3} parent=5 // pred_check_branch
      %218 = sbr.rel (%p215) target = $region32
    $region31: #{unet_block_forward.3} parent=5 // pred_region
      %s219 = ssub.s32 %s12, 1
      %p220 = scmp.lt.s32.totalorder %s21, 1
      %s221 = scalar_select %p220, %s21, 1
      %p222 = scmp.lt.s32.totalorder %s22, 0
      %s223 = scalar_select %p222, %s22, 0
      %s224 = sadd.s32 %s223, %s221
      %s225 = smul.addr %s224, 8
      %s226 = scalar_lea.vmem %s0, %s225
      %p227 = pneg %p52
      %p228 = pneg %p49
      %p229 = pneg %p73
      %p230 = pneg %p70
      %p231 = pneg %p94
      %p232 = pneg %p91
      %p233 = pneg %p122
      %p234 = pneg %p119
      %s235 = smul.u32 8, %s22
      %p236 = scmp.lt.s32.totalorder %s21, 1
      %s237 = scalar_select %p236, %s21, 1
      %p238 = scmp.lt.s32.totalorder %s235, 7
      %s239 = scalar_select %p238, %s235, 7
      %s240 = smul.addr %s239, 4
      %s241 = smul.addr %s237, 32
      %s242 = sadd.s32 %s240, %s241
      %s243 = smul.addr %s242, 4
      %s244 = scalar_lea.vmem %s3, %s243
      %p245 = pneg %p150
      %p246 = pneg %p147
      %p247 = scmp.lt.s32.totalorder %s21, 1
      %s248 = scalar_select %p247, %s21, 1
      %p249 = scmp.lt.s32.totalorder %s22, 0
      %s250 = scalar_select %p249, %s22, 0
      %s251 = smul.addr %s250, 2
      %s252 = smul.addr %s248, 2
      %s253 = sadd.s32 %s251, %s252
      %s254 = scalar_lea.vmem %s4, %s253
      %p255 = pneg %p178
      %p256 = pneg %p175
      %p257 = scmp.lt.s32.totalorder %s21, 1
      %s258 = scalar_select %p257, %s21, 1
      %p259 = scmp.lt.s32.totalorder %s22, 0
      %s260 = scalar_select %p259, %s22, 0
      %s261 = smul.addr %s260, 2
      %s262 = smul.addr %s258, 2
      %s263 = sadd.s32 %s261, %s262
      %s264 = scalar_lea.vmem %s5, %s263
      %p265 = scmp.lt.s32.totalorder %s21, 1
      %s266 = scalar_select %p265, %s21, 1
      %p267 = scmp.lt.s32.totalorder %s22, 0
      %s268 = scalar_select %p267, %s22, 0
      %s269 = sadd.s32 %s268, %s266
      %s270 = smul.addr %s269, 8
      %s271 = scalar_lea.vmem %s0, %s270
      %s272 = smul.u32 8, %s22
      %p273 = scmp.lt.s32.totalorder %s21, 1
      %s274 = scalar_select %p273, %s21, 1
      %p275 = scmp.lt.s32.totalorder %s272, 7
      %s276 = scalar_select %p275, %s272, 7
      %s277 = smul.addr %s276, 4
      %s278 = smul.addr %s274, 32
      %s279 = sadd.s32 %s277, %s278
      %s280 = smul.addr %s279, 4
      %s281 = scalar_lea.vmem %s3, %s280
      %s282 = smul.u32 8, %s22
      %p283 = scmp.lt.s32.totalorder %s21, 1
      %s284 = scalar_select %p283, %s21, 1
      %p285 = scmp.lt.s32.totalorder %s22, 0
      %s286 = scalar_select %p285, %s22, 0
      %s287 = smul.addr %s286, 2
      %s288 = smul.addr %s284, 2
      %s289 = sadd.s32 %s287, %s288
      %s290 = scalar_lea.vmem %s4, %s289
      %p291 = scmp.lt.s32.totalorder %s21, 1
      %s292 = scalar_select %p291, %s21, 1
      %p293 = scmp.lt.s32.totalorder %s22, 0
      %s294 = scalar_select %p293, %s22, 0
      %s295 = smul.addr %s294, 2
      %s296 = smul.addr %s292, 2
      %s297 = sadd.s32 %s295, %s296
      %s298 = scalar_lea.vmem %s5, %s297
      %v300 = vld [vmem:[%s271] sm:$0xff]
      %v301 = vpack.c.bf16 %v300, %v300
      %v302 = vld [vmem:[%s1] sm:$0xff]
      %v303 = vld [vmem:[%s2] sm:$0x3]
      %v305 = vlaneseq
      %v306 = vshrl.u32 %v305, 7
      %v307 = vsub.s32 0, %v306
      %v308 = vrot.slane %v303, %v307
      %v309 = vlaneseq
      %v310 = vshrl.u32 %v309, 7
      %v311 = vsub.s32 1, %v310
      %v312 = vrot.slane %v303, %v311
      %315 = vxpose.xlu0.c.b16.start [1/8] %v301, 128
      %316 = vxpose.xlu0.c.b16.cont [2/8] 0, 128
      %317 = vxpose.xlu0.c.b16.cont [3/8] 0, 128
      %318 = vxpose.xlu0.c.b16.cont [4/8] 0, 128
      %319 = vxpose.xlu0.c.b16.cont [5/8] 0, 128
      %320 = vxpose.xlu0.c.b16.cont [6/8] 0, 128
      %321 = vxpose.xlu0.c.b16.cont [7/8] 0, 128
      %322 = vxpose.xlu0.c.b16.end [8/8] 0, 128
      %v323 = vpop.trf.xlu0
      %v324 = vpop.trf.xlu0
      %v325 = vpop.trf.xlu0
      %v326 = vpop.trf.xlu0
      %v327 = vpop.trf.xlu0
      %v328 = vpop.trf.xlu0
      %v329 = vpop.trf.xlu0
      %v330 = vpop.trf.xlu0
      %v332 = vunpack.c.l.b16 %v302
      %v333 = vunpack.c.h.b16 %v302
      %v334 = vpack.c.b16 %v332, %v332
      %v335 = vpack.c.b16 %v333, %v333
      %vm336 = vcmask 64512
      %v338 = vsel %vm336, %v323, 0
      %v341 = vsel %vm336, %v324, 0
      %v344 = vsel %vm336, %v325, 0
      %v347 = vsel %vm336, %v326, 0
      %vm349 = vcmask 1043456
      %v351 = vsel %vm349, %v334, 0
      %v354 = vsel %vm349, %v335, 0
      %356 = vmatprep.subr.bf16.mxu0 %v354
      %357 = vmatpush1.bf16.msra.mxu0 %v351
      %358 = vmatprep.subr.bf16.mxu0 0
      %359 = vmatpush1.bf16.msra.mxu0 0
      %360 = vmatprep.subr.bf16.mxu0 0
      %361 = vmatpush1.bf16.msra.mxu0 0
      %362 = vmatprep.subr.bf16.mxu0 0
      %363 = vmatpush1.bf16.msra.mxu0 0
      %364 = vmatprep.subr.bf16.mxu0 0
      %365 = vmatpush1.bf16.msra.mxu0 0
      %366 = vmatprep.subr.bf16.mxu0 0
      %367 = vmatpush1.bf16.msra.mxu0 0
      %368 = vmatprep.subr.bf16.mxu0 0
      %369 = vmatpush1.bf16.msra.mxu0 0
      %370 = vmatprep.subr.bf16.mxu0 0
      %371 = vmatpush1.bf16.msra.mxu0 0
      %372 = vmatprep.subr.bf16.mxu0 0
      %373 = vmatpush1.bf16.msra.mxu0 0
      %374 = vmatprep.subr.bf16.mxu0 0
      %375 = vmatpush1.bf16.msra.mxu0 0
      %376 = vmatprep.subr.bf16.mxu0 0
      %377 = vmatpush1.bf16.msra.mxu0 0
      %378 = vmatprep.subr.bf16.mxu0 0
      %379 = vmatpush1.bf16.msra.mxu0 0
      %380 = vmatprep.subr.bf16.mxu0 0
      %381 = vmatpush1.bf16.msra.mxu0 0
      %382 = vmatprep.subr.bf16.mxu0 0
      %383 = vmatpush1.bf16.msra.mxu0 0
      %384 = vmatprep.subr.bf16.mxu0 0
      %385 = vmatpush1.bf16.msra.mxu0 0
      %386 = vmatprep.subr.bf16.mxu0 0
      %387 = vmatpush1.bf16.msra.mxu0 0
      %388 = vmatprep.mubr.bf16.mxu0 0
      %389 = vmatmul.mubr.bf16.gmra.mrb[0].mxu0 %v338
      %v390 = vpop.f32.mrb[0].mxu0
      %v391 = vadd.f32 %v308, %v390
      %v392 = vpop.f32.mrb[0].mxu0
      %v393 = vadd.f32 %v312, %v392
      %v394 = vpop.f32.mrb[0].mxu0
      %v395 = vadd.f32 %v308, %v394
      %v396 = vpop.f32.mrb[0].mxu0
      %v397 = vadd.f32 %v312, %v396
      %398 = vmatprep.mubr.bf16.mxu0 0
      %399 = vmatmul.mubr.bf16.gmra.mrb[0].mxu0 %v341
      %v400 = vpop.f32.mrb[0].mxu0
      %v401 = vadd.f32 %v308, %v400
      %v402 = vpop.f32.mrb[0].mxu0
      %v403 = vadd.f32 %v312, %v402
      %v404 = vpop.f32.mrb[0].mxu0
      %v405 = vadd.f32 %v308, %v404
      %v406 = vpop.f32.mrb[0].mxu0
      %v407 = vadd.f32 %v312, %v406
      %408 = vmatprep.mubr.bf16.mxu0 0
      %409 = vmatmul.mubr.bf16.gmra.mrb[0].mxu0 %v344
      %v410 = vpop.f32.mrb[0].mxu0
      %v411 = vadd.f32 %v308, %v410
      %v412 = vpop.f32.mrb[0].mxu0
      %v413 = vadd.f32 %v312, %v412
      %v414 = vpop.f32.mrb[0].mxu0
      %v415 = vadd.f32 %v308, %v414
      %v416 = vpop.f32.mrb[0].mxu0
      %v417 = vadd.f32 %v312, %v416
      %418 = vmatprep.mubr.bf16.mxu0 0
      %419 = vmatmul.mubr.bf16.gmra.mrb[0].mxu0 %v347
      %v420 = vpop.f32.mrb[0].mxu0
      %v421 = vadd.f32 %v308, %v420
      %v422 = vpop.f32.mrb[0].mxu0
      %v423 = vadd.f32 %v312, %v422
      %v424 = vpop.f32.mrb[0].mxu0
      %v425 = vadd.f32 %v308, %v424
      %v426 = vpop.f32.mrb[0].mxu0
      %v427 = vadd.f32 %v312, %v426
      %428 = vdwg.mxu0
      %v429 = vmax.f32 %v391, 0.0
      %v430 = vmax.f32 %v393, 0.0
      %v431 = vmax.f32 %v395, 0.0
      %v432 = vmax.f32 %v397, 0.0
      %v433 = vmax.f32 %v401, 0.0
      %v434 = vmax.f32 %v403, 0.0
      %v435 = vmax.f32 %v405, 0.0
      %v436 = vmax.f32 %v407, 0.0
      %v437 = vmax.f32 %v411, 0.0
      %v438 = vmax.f32 %v413, 0.0
      %v439 = vmax.f32 %v415, 0.0
      %v440 = vmax.f32 %v417, 0.0
      %v441 = vmax.f32 %v421, 0.0
      %v442 = vmax.f32 %v423, 0.0
      %v443 = vmax.f32 %v425, 0.0
      %v444 = vmax.f32 %v427, 0.0
      %v445 = vpack.c.bf16 %v429, %v429
      %v446 = vpack.c.bf16 %v430, %v430
      %v447 = vpack.c.bf16 %v431, %v431
      %v448 = vpack.c.bf16 %v432, %v432
      %v449 = vpack.c.bf16 %v433, %v433
      %v450 = vpack.c.bf16 %v434, %v434
      %v451 = vpack.c.bf16 %v435, %v435
      %v452 = vpack.c.bf16 %v436, %v436
      %v453 = vpack.c.bf16 %v437, %v437
      %v454 = vpack.c.bf16 %v438, %v438
      %v455 = vpack.c.bf16 %v439, %v439
      %v456 = vpack.c.bf16 %v440, %v440
      %v457 = vpack.c.bf16 %v441, %v441
      %v458 = vpack.c.bf16 %v442, %v442
      %v459 = vpack.c.bf16 %v443, %v443
      %v460 = vpack.c.bf16 %v444, %v444
      %v477 = vunpack.c.l.b16 %v445
      %v478 = vunpack.c.l.b16 %v446
      %v479 = vunpack.c.l.b16 %v447
      %v480 = vunpack.c.l.b16 %v448
      %v481 = vunpack.c.l.b16 %v449
      %v482 = vunpack.c.l.b16 %v450
      %v483 = vunpack.c.l.b16 %v451
      %v484 = vunpack.c.l.b16 %v452
      %v485 = vunpack.c.l.b16 %v453
      %v486 = vunpack.c.l.b16 %v454
      %v487 = vunpack.c.l.b16 %v455
      %v488 = vunpack.c.l.b16 %v456
      %v489 = vunpack.c.l.b16 %v457
      %v490 = vunpack.c.l.b16 %v458
      %v491 = vunpack.c.l.b16 %v459
      %v492 = vunpack.c.l.b16 %v460
      %v493 = vpack.c.b16 %v478, %v477
      %v494 = vpack.c.b16 %v480, %v479
      %v495 = vpack.c.b16 %v482, %v481
      %v496 = vpack.c.b16 %v484, %v483
      %v497 = vpack.c.b16 %v486, %v485
      %v498 = vpack.c.b16 %v488, %v487
      %v499 = vpack.c.b16 %v490, %v489
      %v500 = vpack.c.b16 %v492, %v491
      %509 = vst [vmem:[%s281] sm:$0xff] %v493
      %510 = vst [vmem:[%s281 + $0x10] sm:$0xff] %v494
      %511 = vst [vmem:[%s281 + $0x20] sm:$0xff] %v495
      %512 = vst [vmem:[%s281 + $0x30] sm:$0xff] %v496
      %513 = vst [vmem:[%s281 + $0x40] sm:$0xff] %v497
      %514 = vst [vmem:[%s281 + $0x50] sm:$0xff] %v498
      %515 = vst [vmem:[%s281 + $0x60] sm:$0xff] %v499
      %516 = vst [vmem:[%s281 + $0x70] sm:$0xff] %v500
      %v517 = vadd.f32 %v429, %v431
      %v518 = vadd.f32 %v517, %v433
      %v519 = vadd.f32 %v518, %v435
      %v520 = vadd.f32 %v519, %v437
      %v521 = vadd.f32 %v520, %v439
      %v522 = vadd.f32 %v521, %v441
      %v523 = vadd.f32 %v522, %v443
      %v524 = vrot.slane %v523, 4
      %v525 = vadd.f32 %v523, %v524
      %v526 = vrot.slane %v525, 2
      %v527 = vadd.f32 %v525, %v526
      %v528 = vrot.slane %v527, 1
      %v529 = vadd.f32 %v527, %v528
      %v530 = vadd.f32 %v430, %v432
      %v531 = vadd.f32 %v530, %v434
      %v532 = vadd.f32 %v531, %v436
      %v533 = vadd.f32 %v532, %v438
      %v534 = vadd.f32 %v533, %v440
      %v535 = vadd.f32 %v534, %v442
      %v536 = vadd.f32 %v535, %v444
      %v537 = vrot.slane %v536, 4
      %v538 = vadd.f32 %v536, %v537
      %v539 = vrot.slane %v538, 2
      %v540 = vadd.f32 %v538, %v539
      %v541 = vrot.slane %v540, 1
      %v542 = vadd.f32 %v540, %v541
      %v543 = vadd.f32 %v529, 0.0
      %v544 = vadd.f32 %v542, 0.0
      %v545 = vmul.f32 %v429, %v429
      %v546 = vmul.f32 %v430, %v430
      %v547 = vmul.f32 %v431, %v431
      %v548 = vmul.f32 %v432, %v432
      %v549 = vmul.f32 %v433, %v433
      %v550 = vmul.f32 %v434, %v434
      %v551 = vmul.f32 %v435, %v435
      %v552 = vmul.f32 %v436, %v436
      %v553 = vmul.f32 %v437, %v437
      %v554 = vmul.f32 %v438, %v438
      %v555 = vmul.f32 %v439, %v439
      %v556 = vmul.f32 %v440, %v440
      %v557 = vmul.f32 %v441, %v441
      %v558 = vmul.f32 %v442, %v442
      %v559 = vmul.f32 %v443, %v443
      %v560 = vmul.f32 %v444, %v444
      %v561 = vadd.f32 %v545, %v547
      %v562 = vadd.f32 %v561, %v549
      %v563 = vadd.f32 %v562, %v551
      %v564 = vadd.f32 %v563, %v553
      %v565 = vadd.f32 %v564, %v555
      %v566 = vadd.f32 %v565, %v557
      %v567 = vadd.f32 %v566, %v559
      %v568 = vrot.slane %v567, 4
      %v569 = vadd.f32 %v567, %v568
      %v570 = vrot.slane %v569, 2
      %v571 = vadd.f32 %v569, %v570
      %v572 = vrot.slane %v571, 1
      %v573 = vadd.f32 %v571, %v572
      %v574 = vadd.f32 %v546, %v548
      %v575 = vadd.f32 %v574, %v550
      %v576 = vadd.f32 %v575, %v552
      %v577 = vadd.f32 %v576, %v554
      %v578 = vadd.f32 %v577, %v556
      %v579 = vadd.f32 %v578, %v558
      %v580 = vadd.f32 %v579, %v560
      %v581 = vrot.slane %v580, 4
      %v582 = vadd.f32 %v580, %v581
      %v583 = vrot.slane %v582, 2
      %v584 = vadd.f32 %v582, %v583
      %v585 = vrot.slane %v584, 1
      %v586 = vadd.f32 %v584, %v585
      %v587 = vadd.f32 %v573, 0.0
      %v588 = vadd.f32 %v586, 0.0
      %s589 = scalar_lea.vmem %s1, 8
      %v590 = vld [vmem:[%s589] sm:$0xff]
      %v591 = vld [vmem:[%s2] sm:$0x3]
      %v593 = vlaneseq
      %v594 = vshrl.u32 %v593, 7
      %v595 = vsub.s32 0, %v594
      %v596 = vrot.slane %v591, %v595
      %v597 = vlaneseq
      %v598 = vshrl.u32 %v597, 7
      %v599 = vsub.s32 1, %v598
      %v600 = vrot.slane %v591, %v599
      %v604 = vunpack.c.l.b16 %v590
      %v605 = vunpack.c.h.b16 %v590
      %v606 = vpack.c.b16 %v604, %v604
      %v607 = vpack.c.b16 %v605, %v605
      %v609 = vsel %vm349, %v606, 0
      %v612 = vsel %vm349, %v607, 0
      %614 = vmatprep.subr.bf16.mxu0 %v612
      %615 = vmatpush1.bf16.msra.mxu0 %v609
      %616 = vmatprep.subr.bf16.mxu0 0
      %617 = vmatpush1.bf16.msra.mxu0 0
      %618 = vmatprep.subr.bf16.mxu0 0
      %619 = vmatpush1.bf16.msra.mxu0 0
      %620 = vmatprep.subr.bf16.mxu0 0
      %621 = vmatpush1.bf16.msra.mxu0 0
      %622 = vmatprep.subr.bf16.mxu0 0
      %623 = vmatpush1.bf16.msra.mxu0 0
      %624 = vmatprep.subr.bf16.mxu0 0
      %625 = vmatpush1.bf16.msra.mxu0 0
      %626 = vmatprep.subr.bf16.mxu0 0
      %627 = vmatpush1.bf16.msra.mxu0 0
      %628 = vmatprep.subr.bf16.mxu0 0
      %629 = vmatpush1.bf16.msra.mxu0 0
      %630 = vmatprep.subr.bf16.mxu0 0
      %631 = vmatpush1.bf16.msra.mxu0 0
      %632 = vmatprep.subr.bf16.mxu0 0
      %633 = vmatpush1.bf16.msra.mxu0 0
      %634 = vmatprep.subr.bf16.mxu0 0
      %635 = vmatpush1.bf16.msra.mxu0 0
      %636 = vmatprep.subr.bf16.mxu0 0
      %637 = vmatpush1.bf16.msra.mxu0 0
      %638 = vmatprep.subr.bf16.mxu0 0
      %639 = vmatpush1.bf16.msra.mxu0 0
      %640 = vmatprep.subr.bf16.mxu0 0
      %641 = vmatpush1.bf16.msra.mxu0 0
      %642 = vmatprep.subr.bf16.mxu0 0
      %643 = vmatpush1.bf16.msra.mxu0 0
      %644 = vmatprep.subr.bf16.mxu0 0
      %645 = vmatpush1.bf16.msra.mxu0 0
      %646 = vmatprep.mubr.bf16.mxu0 0
      %647 = vmatmul.mubr.bf16.gmra.mrb[0].mxu0 %v338
      %v648 = vpop.f32.mrb[0].mxu0
      %v649 = vadd.f32 %v596, %v648
      %v650 = vpop.f32.mrb[0].mxu0
      %v651 = vadd.f32 %v600, %v650
      %v652 = vpop.f32.mrb[0].mxu0
      %v653 = vadd.f32 %v596, %v652
      %v654 = vpop.f32.mrb[0].mxu0
      %v655 = vadd.f32 %v600, %v654
      %656 = vmatprep.mubr.bf16.mxu0 0
      %657 = vmatmul.mubr.bf16.gmra.mrb[0].mxu0 %v341
      %v658 = vpop.f32.mrb[0].mxu0
      %v659 = vadd.f32 %v596, %v658
      %v660 = vpop.f32.mrb[0].mxu0
      %v661 = vadd.f32 %v600, %v660
      %v662 = vpop.f32.mrb[0].mxu0
      %v663 = vadd.f32 %v596, %v662
      %v664 = vpop.f32.mrb[0].mxu0
      %v665 = vadd.f32 %v600, %v664
      %666 = vmatprep.mubr.bf16.mxu0 0
      %667 = vmatmul.mubr.bf16.gmra.mrb[0].mxu0 %v344
      %v668 = vpop.f32.mrb[0].mxu0
      %v669 = vadd.f32 %v596, %v668
      %v670 = vpop.f32.mrb[0].mxu0
      %v671 = vadd.f32 %v600, %v670
      %v672 = vpop.f32.mrb[0].mxu0
      %v673 = vadd.f32 %v596, %v672
      %v674 = vpop.f32.mrb[0].mxu0
      %v675 = vadd.f32 %v600, %v674
      %676 = vmatprep.mubr.bf16.mxu0 0
      %677 = vmatmul.mubr.bf16.gmra.mrb[0].mxu0 %v347
      %v678 = vpop.f32.mrb[0].mxu0
      %v679 = vadd.f32 %v596, %v678
      %v680 = vpop.f32.mrb[0].mxu0
      %v681 = vadd.f32 %v600, %v680
      %v682 = vpop.f32.mrb[0].mxu0
      %v683 = vadd.f32 %v596, %v682
      %v684 = vpop.f32.mrb[0].mxu0
      %v685 = vadd.f32 %v600, %v684
      %686 = vdwg.mxu0
      %v687 = vmax.f32 %v649, 0.0
      %v688 = vmax.f32 %v651, 0.0
      %v689 = vmax.f32 %v653, 0.0
      %v690 = vmax.f32 %v655, 0.0
      %v691 = vmax.f32 %v659, 0.0
      %v692 = vmax.f32 %v661, 0.0
      %v693 = vmax.f32 %v663, 0.0
      %v694 = vmax.f32 %v665, 0.0
      %v695 = vmax.f32 %v669, 0.0
      %v696 = vmax.f32 %v671, 0.0
      %v697 = vmax.f32 %v673, 0.0
      %v698 = vmax.f32 %v675, 0.0
      %v699 = vmax.f32 %v679, 0.0
      %v700 = vmax.f32 %v681, 0.0
      %v701 = vmax.f32 %v683, 0.0
      %v702 = vmax.f32 %v685, 0.0
      %v703 = vpack.c.bf16 %v687, %v687
      %v704 = vpack.c.bf16 %v688, %v688
      %v705 = vpack.c.bf16 %v689, %v689
      %v706 = vpack.c.bf16 %v690, %v690
      %v707 = vpack.c.bf16 %v691, %v691
      %v708 = vpack.c.bf16 %v692, %v692
      %v709 = vpack.c.bf16 %v693, %v693
      %v710 = vpack.c.bf16 %v694, %v694
      %v711 = vpack.c.bf16 %v695, %v695
      %v712 = vpack.c.bf16 %v696, %v696
      %v713 = vpack.c.bf16 %v697, %v697
      %v714 = vpack.c.bf16 %v698, %v698
      %v715 = vpack.c.bf16 %v699, %v699
      %v716 = vpack.c.bf16 %v700, %v700
      %v717 = vpack.c.bf16 %v701, %v701
      %v718 = vpack.c.bf16 %v702, %v702
      %v735 = vunpack.c.l.b16 %v703
      %v736 = vunpack.c.l.b16 %v704
      %v737 = vunpack.c.l.b16 %v705
      %v738 = vunpack.c.l.b16 %v706
      %v739 = vunpack.c.l.b16 %v707
      %v740 = vunpack.c.l.b16 %v708
      %v741 = vunpack.c.l.b16 %v709
      %v742 = vunpack.c.l.b16 %v710
      %v743 = vunpack.c.l.b16 %v711
      %v744 = vunpack.c.l.b16 %v712
      %v745 = vunpack.c.l.b16 %v713
      %v746 = vunpack.c.l.b16 %v714
      %v747 = vunpack.c.l.b16 %v715
      %v748 = vunpack.c.l.b16 %v716
      %v749 = vunpack.c.l.b16 %v717
      %v750 = vunpack.c.l.b16 %v718
      %v751 = vpack.c.b16 %v736, %v735
      %v752 = vpack.c.b16 %v738, %v737
      %v753 = vpack.c.b16 %v740, %v739
      %v754 = vpack.c.b16 %v742, %v741
      %v755 = vpack.c.b16 %v744, %v743
      %v756 = vpack.c.b16 %v746, %v745
      %v757 = vpack.c.b16 %v748, %v747
      %v758 = vpack.c.b16 %v750, %v749
      %s767 = scalar_lea.vmem %s281, 8
      %768 = vst [vmem:[%s767] sm:$0xff] %v751
      %769 = vst [vmem:[%s767 + $0x10] sm:$0xff] %v752
      %770 = vst [vmem:[%s767 + $0x20] sm:$0xff] %v753
      %771 = vst [vmem:[%s767 + $0x30] sm:$0xff] %v754
      %772 = vst [vmem:[%s767 + $0x40] sm:$0xff] %v755
      %773 = vst [vmem:[%s767 + $0x50] sm:$0xff] %v756
      %774 = vst [vmem:[%s767 + $0x60] sm:$0xff] %v757
      %775 = vst [vmem:[%s767 + $0x70] sm:$0xff] %v758
      %v776 = vadd.f32 %v687, %v689
      %v777 = vadd.f32 %v776, %v691
      %v778 = vadd.f32 %v777, %v693
      %v779 = vadd.f32 %v778, %v695
      %v780 = vadd.f32 %v779, %v697
      %v781 = vadd.f32 %v780, %v699
      %v782 = vadd.f32 %v781, %v701
      %v783 = vrot.slane %v782, 4
      %v784 = vadd.f32 %v782, %v783
      %v785 = vrot.slane %v784, 2
      %v786 = vadd.f32 %v784, %v785
      %v787 = vrot.slane %v786, 1
      %v788 = vadd.f32 %v786, %v787
      %v789 = vadd.f32 %v688, %v690
      %v790 = vadd.f32 %v789, %v692
      %v791 = vadd.f32 %v790, %v694
      %v792 = vadd.f32 %v791, %v696
      %v793 = vadd.f32 %v792, %v698
      %v794 = vadd.f32 %v793, %v700
      %v795 = vadd.f32 %v794, %v702
      %v796 = vrot.slane %v795, 4
      %v797 = vadd.f32 %v795, %v796
      %v798 = vrot.slane %v797, 2
      %v799 = vadd.f32 %v797, %v798
      %v800 = vrot.slane %v799, 1
      %v801 = vadd.f32 %v799, %v800
      %v802 = vadd.f32 %v543, %v788
      %v803 = vadd.f32 %v544, %v801
      %v804 = vmul.f32 %v687, %v687
      %v805 = vmul.f32 %v688, %v688
      %v806 = vmul.f32 %v689, %v689
      %v807 = vmul.f32 %v690, %v690
      %v808 = vmul.f32 %v691, %v691
      %v809 = vmul.f32 %v692, %v692
      %v810 = vmul.f32 %v693, %v693
      %v811 = vmul.f32 %v694, %v694
      %v812 = vmul.f32 %v695, %v695
      %v813 = vmul.f32 %v696, %v696
      %v814 = vmul.f32 %v697, %v697
      %v815 = vmul.f32 %v698, %v698
      %v816 = vmul.f32 %v699, %v699
      %v817 = vmul.f32 %v700, %v700
      %v818 = vmul.f32 %v701, %v701
      %v819 = vmul.f32 %v702, %v702
      %v820 = vadd.f32 %v804, %v806
      %v821 = vadd.f32 %v820, %v808
      %v822 = vadd.f32 %v821, %v810
      %v823 = vadd.f32 %v822, %v812
      %v824 = vadd.f32 %v823, %v814
      %v825 = vadd.f32 %v824, %v816
      %v826 = vadd.f32 %v825, %v818
      %v827 = vrot.slane %v826, 4
      %v828 = vadd.f32 %v826, %v827
      %v829 = vrot.slane %v828, 2
      %v830 = vadd.f32 %v828, %v829
      %v831 = vrot.slane %v830, 1
      %v832 = vadd.f32 %v830, %v831
      %v833 = vadd.f32 %v805, %v807
      %v834 = vadd.f32 %v833, %v809
      %v835 = vadd.f32 %v834, %v811
      %v836 = vadd.f32 %v835, %v813
      %v837 = vadd.f32 %v836, %v815
      %v838 = vadd.f32 %v837, %v817
      %v839 = vadd.f32 %v838, %v819
      %v840 = vrot.slane %v839, 4
      %v841 = vadd.f32 %v839, %v840
      %v842 = vrot.slane %v841, 2
      %v843 = vadd.f32 %v841, %v842
      %v844 = vrot.slane %v843, 1
      %v845 = vadd.f32 %v843, %v844
      %v846 = vadd.f32 %v587, %v832
      %v847 = vadd.f32 %v588, %v845
      %v850 = vcombine.low %v802, %v803
      %v852 = vunpack.c.l.s4 1966171168
      %v853 = vunpack.c.0.s8 %v852
      %v854 = vlaneseq
      %v855 = vshrl.u32 %v854, 7
      %v856 = vsub.s32 %v853, %v855
      %v857 = vrot.slane %v850, %v856
      %v859 = vunpack.c.l.s4 1966171168
      %v860 = vunpack.c.0.s8 %v859
      %v861 = vlaneseq
      %v862 = vshrl.u32 %v861, 7
      %v863 = vsub.s32 %v860, %v862
      %v864 = vrot.slane %v857, %v863
      %v866 = vlaneseq
      %vm867 = vcmp.ge.s32.totalorder %v866, 0
      %vm868 = vcmp.lt.s32.totalorder %v866, 256
      %vm869 = vmand %vm867, %vm868
      %870 = vst.msk [vmem:[%s290] sm:$0x3] %vm869, %v864
      %v873 = vcombine.low %v846, %v847
      %v875 = vunpack.c.l.s4 1966171168
      %v876 = vunpack.c.0.s8 %v875
      %v877 = vlaneseq
      %v878 = vshrl.u32 %v877, 7
      %v879 = vsub.s32 %v876, %v878
      %v880 = vrot.slane %v873, %v879
      %v882 = vunpack.c.l.s4 1966171168
      %v883 = vunpack.c.0.s8 %v882
      %v884 = vlaneseq
      %v885 = vshrl.u32 %v884, 7
      %v886 = vsub.s32 %v883, %v885
      %v887 = vrot.slane %v880, %v886
      %889 = vst.msk [vmem:[%s298] sm:$0x3] %vm869, %v887
      %s890 = smul.u32 8, %s22
      %p891 = scmp.lt.s32.totalorder %s21, 1
      %s892 = scalar_select %p891, %s21, 1
      %p893 = scmp.lt.s32.totalorder %s890, 7
      %s894 = scalar_select %p893, %s890, 7
      %s895 = smul.addr %s894, 4
      %s896 = smul.addr %s892, 32
      %s897 = sadd.s32 %s895, %s896
      %s898 = smul.addr %s897, 4
      %s899 = scalar_lea.vmem %s3, %s898
      %p900 = scmp.lt.s32.totalorder %s21, 1
      %s901 = scalar_select %p900, %s21, 1
      %p902 = scmp.lt.s32.totalorder %s22, 0
      %s903 = scalar_select %p902, %s22, 0
      %s904 = smul.addr %s903, 2
      %s905 = smul.addr %s901, 2
      %s906 = sadd.s32 %s904, %s905
      %s907 = scalar_lea.vmem %s4, %s906
      %p908 = scmp.lt.s32.totalorder %s21, 1
      %s909 = scalar_select %p908, %s21, 1
      %p910 = scmp.lt.s32.totalorder %s22, 0
      %s911 = scalar_select %p910, %s22, 0
      %s912 = smul.addr %s911, 2
      %s913 = smul.addr %s909, 2
      %s914 = sadd.s32 %s912, %s913
      %s915 = scalar_lea.vmem %s5, %s914
      // Predicated region
      $region33: #{unet_block_forward.3} parent=31 // pred_check
        %p916 = pneg %p119
      $region34: #{unet_block_forward.3} parent=31 // pred_check_branch
        %918 = sbr.rel (%p916) target = $region36
      $region35: #{unet_block_forward.3} parent=31 // pred_region
        %s919 = smul.u32 8, %s22
      $region36: #{unet_block_forward.3} parent=31 // pred_fallthru
        _
      // Predicated region
      $region37: #{unet_block_forward.3} parent=31 // pred_check
        %p920 = pneg %p147
      $region38: #{unet_block_forward.3} parent=31 // pred_check_branch
        %922 = sbr.rel (%p920) target = $region40
      $region39: #{unet_block_forward.3} parent=31 // pred_region
        _
      $region40: #{unet_block_forward.3} parent=31 // pred_fallthru
        _
      // Predicated region
      $region41: #{unet_block_forward.3} parent=31 // pred_check
        %p923 = pneg %p175
      $region42: #{unet_block_forward.3} parent=31 // pred_check_branch
        %925 = sbr.rel (%p923) target = $region44
      $region43: #{unet_block_forward.3} parent=31 // pred_region
        _
      $region44: #{unet_block_forward.3} parent=31 // pred_fallthru
        _
    $region32: #{unet_block_forward.3} parent=5 // pred_fallthru
      _
    %p926 = scmp.le.s32.totalorder 2, %s12
    // Predicated region
    $region45: #{unet_block_forward.3} parent=5 // pred_check
      %p927 = pneg %p926
    $region46: #{unet_block_forward.3} parent=5 // pred_check_branch
      %929 = sbr.rel (%p927) target = $region48
    $region47: #{unet_block_forward.3} parent=5 // pred_region
      %s930 = ssub.s32 %s12, 2
      // Predicated region
      $region49: #{unet_block_forward.3} parent=47 // pred_check
        %p931 = pneg %p125
      $region50: #{unet_block_forward.3} parent=47 // pred_check_branch
        %933 = sbr.rel (%p931) target = $region52
      $region51: #{unet_block_forward.3} parent=47 // pred_region
        %s934 = smul.u32 8, %s24
        %p935 = scmp.lt.s32.totalorder %s23, 1
        %s936 = scalar_select %p935, %s23, 1
        %p937 = scmp.lt.s32.totalorder %s934, 7
        %s938 = scalar_select %p937, %s934, 7
        %s939 = smul.addr %s938, 4
        %s940 = smul.addr %s936, 32
        %s941 = sadd.s32 %s939, %s940
        %s942 = smul.addr %s941, 4
        %s943 = scalar_lea.vmem %s3, %s942
      $region52: #{unet_block_forward.3} parent=47 // pred_fallthru
        _
      // Predicated region
      $region53: #{unet_block_forward.3} parent=47 // pred_check
        %p944 = pneg %p153
      $region54: #{unet_block_forward.3} parent=47 // pred_check_branch
        %946 = sbr.rel (%p944) target = $region56
      $region55: #{unet_block_forward.3} parent=47 // pred_region
        %p947 = scmp.lt.s32.totalorder %s23, 1
        %s948 = scalar_select %p947, %s23, 1
        %p949 = scmp.lt.s32.totalorder %s24, 0
        %s950 = scalar_select %p949, %s24, 0
        %s951 = smul.addr %s950, 2
        %s952 = smul.addr %s948, 2
        %s953 = sadd.s32 %s951, %s952
        %s954 = scalar_lea.vmem %s4, %s953
      $region56: #{unet_block_forward.3} parent=47 // pred_fallthru
        _
      // Predicated region
      $region57: #{unet_block_forward.3} parent=47 // pred_check
        %p955 = pneg %p181
      $region58: #{unet_block_forward.3} parent=47 // pred_check_branch
        %957 = sbr.rel (%p955) target = $region60
      $region59: #{unet_block_forward.3} parent=47 // pred_region
        %p958 = scmp.lt.s32.totalorder %s23, 1
        %s959 = scalar_select %p958, %s23, 1
        %p960 = scmp.lt.s32.totalorder %s24, 0
        %s961 = scalar_select %p960, %s24, 0
        %s962 = smul.addr %s961, 2
        %s963 = smul.addr %s959, 2
        %s964 = sadd.s32 %s962, %s963
        %s965 = scalar_lea.vmem %s5, %s964
      $region60: #{unet_block_forward.3} parent=47 // pred_fallthru
        _
    $region48: #{unet_block_forward.3} parent=5 // pred_fallthru
      _
  $region6: #{unet_block_forward.3} parent=0 // loop_footer
    %s16 = sadd.s32 1, %s12
  $region7: #{unet_block_forward.3} parent=0 // loop_footer_branch
    %11 = sbr.rel target = $region3
  $region8: #{unet_block_forward.3} parent=0 // loop_exit
    _

// kernel: unet_block_forward.5
$region0: #{unet_block_forward.5}
  #allocation0 [shape = 'u32[]', space=smem, size = 0x4, offset = 0x4, fixed_abs, tag = 'smem constant byte address 0x4 - core index']
  #allocation1 [shape = 'u32[144,128]{1,0:T(1,128)}', space=vmem, size = 0x12000, scoped, tag = 'internal scratch']
  %s0 = inlined_call_operand.vmem [shape: bf16[2,256,128], index: 0, kind: input, shape index: {}]
  %s1 = inlined_call_operand.vmem [shape: bf16[2,256,128], index: 1, kind: input, shape index: {}]
  %s2 = inlined_call_operand.vmem [shape: f32[1,128], index: 2, kind: input, shape index: {}]
  %s3 = inlined_call_operand.vmem [shape: f32[1,128], index: 3, kind: input, shape index: {}]
  %s4 = inlined_call_operand.vmem [shape: f32[1,128], index: 4, kind: input, shape index: {}]
  %s5 = inlined_call_operand.vmem [shape: f32[1,128], index: 5, kind: input, shape index: {}]
  %s6 = inlined_call_operand.vmem [shape: f32[2,8,256], index: 6, kind: output, shape index: {}]
  %s7 = sld [smem:[#allocation0]]
  $region57: #{unet_block_forward.5} parent=0
    _
  %s9 = ssub.s32 1, %s7
  %s10 = scalar_select 0, %s9, %s7
  loop: start=0, step=1, limit=4
  $region2: #{unet_block_forward.5} parent=0 // loop_pre_header
    _
  $region3: #{unet_block_forward.5} parent=0 // loop_header
    %s12 = sphi 0, %s16
    %p13 = scmp.ge.s32.totalorder %s12, 4
    %s19 = sphi 0, %s31
    %s20 = sphi 0, %s27
    %s21 = sphi 0, %s19
    %s22 = sphi 0, %s20
    %s23 = sphi 0, %s21
    %s24 = sphi 0, %s22
    %s36 = sphi 0, %s38
    %s39 = sphi 0, %s36
    %s40 = sphi 0, %s39
    %s56 = sphi 0, %s40
    %s64 = sphi 0, %s66
    %s67 = sphi 0, %s64
    %s68 = sphi 0, %s67
    %s84 = sphi 0, %s68
    %s88 = sphi 0, %s88
    %s90 = sphi 0, %s88
    %s91 = sphi 0, %s90
    %s105 = sphi 0, %s91
    %s109 = sphi 0, %s109
    %s111 = sphi 0, %s109
    %s112 = sphi 0, %s111
    %s126 = sphi 0, %s112
    %s130 = sphi 0, %s130
    %s132 = sphi 0, %s130
    %s133 = sphi 0, %s132
    %s147 = sphi 0, %s133
    %s151 = sphi 0, %s151
    %s153 = sphi 0, %s151
    %s154 = sphi 0, %s153
    %s168 = sphi 0, %s154
    %s176 = sphi 0, %s178
    %s179 = sphi 0, %s176
    %s180 = sphi 0, %s179
    %s196 = sphi 0, %s180
  $region4: #{unet_block_forward.5} parent=0 // loop_header_branch
    %15 = sbr.rel (%p13) target = $region8
  $region5: #{unet_block_forward.5} parent=0 // loop_body
    %s17 = ssub.s32 %s12, 1
    %s18 = ssub.s32 %s12, 2
    %s25 = sadd.s32 1, %s20
    %p26 = scmp.ge.s32.totalorder %s25, 2
    %s27 = scalar_select %p26, 0, %s25
    %s28 = sadd.s32 1, %s19
    %s29 = scalar_select %p26, %s28, %s19
    %p30 = scmp.ge.s32.totalorder %s29, 1
    %s31 = scalar_select %p30, 0, %s29
    %s32 = ssub.s32 %s20, %s27
    %s33 = ssub.s32 %s19, %s31
    %s34 = sor.u32 %s32, %s33
    %p35 = scmp.eq.s32.totalorder %s34, 0
    %s37 = sadd.s32 %s36, 1
    %s38 = scalar_select %p35, %s36, %s37
    %p41 = pneg %p35
    %p42 = scmp.eq.s32.totalorder %s12, 1
    %p43 = por %p41, %p42
    %p44 = scmp.ne.s32.totalorder %s36, %s39
    %p45 = scmp.eq.s32.totalorder %s12, 0
    %p46 = por %p44, %p45
    %p47 = scmp.ne.s32.totalorder %s36, %s39
    %p48 = scmp.eq.s32.totalorder %s17, 1
    %p49 = por %p47, %p48
    %p50 = scmp.ne.s32.totalorder %s39, %s40
    %p51 = scmp.eq.s32.totalorder %s17, 0
    %p52 = por %p50, %p51
    %p53 = scmp.ne.s32.totalorder %s39, %s40
    %p54 = scmp.eq.s32.totalorder %s18, 1
    %p55 = por %p53, %p54
    %p57 = scmp.ne.s32.totalorder %s40, %s56
    %p58 = scmp.eq.s32.totalorder %s18, 0
    %p59 = por %p57, %p58
    %s60 = ssub.s32 %s20, %s27
    %s61 = ssub.s32 %s19, %s31
    %s62 = sor.u32 %s60, %s61
    %p63 = scmp.eq.s32.totalorder %s62, 0
    %s65 = sadd.s32 %s64, 1
    %s66 = scalar_select %p63, %s64, %s65
    %p69 = pneg %p63
    %p70 = scmp.eq.s32.totalorder %s12, 1
    %p71 = por %p69, %p70
    %p72 = scmp.ne.s32.totalorder %s64, %s67
    %p73 = scmp.eq.s32.totalorder %s12, 0
    %p74 = por %p72, %p73
    %p75 = scmp.ne.s32.totalorder %s64, %s67
    %p76 = scmp.eq.s32.totalorder %s17, 1
    %p77 = por %p75, %p76
    %p78 = scmp.ne.s32.totalorder %s67, %s68
    %p79 = scmp.eq.s32.totalorder %s17, 0
    %p80 = por %p78, %p79
    %p81 = scmp.ne.s32.totalorder %s67, %s68
    %p82 = scmp.eq.s32.totalorder %s18, 1
    %p83 = por %p81, %p82
    %p85 = scmp.ne.s32.totalorder %s68, %s84
    %p86 = scmp.eq.s32.totalorder %s18, 0
    %p87 = por %p85, %p86
    %s89 = sadd.s32 %s88, 1
    %p92 = scmp.eq.s32.totalorder %s12, 1
    %p93 = scmp.ne.s32.totalorder %s88, %s90
    %p94 = scmp.eq.s32.totalorder %s12, 0
    %p95 = por %p93, %p94
    %p96 = scmp.ne.s32.totalorder %s88, %s90
    %p97 = scmp.eq.s32.totalorder %s17, 1
    %p98 = por %p96, %p97
    %p99 = scmp.ne.s32.totalorder %s90, %s91
    %p100 = scmp.eq.s32.totalorder %s17, 0
    %p101 = por %p99, %p100
    %p102 = scmp.ne.s32.totalorder %s90, %s91
    %p103 = scmp.eq.s32.totalorder %s18, 1
    %p104 = por %p102, %p103
    %p106 = scmp.ne.s32.totalorder %s91, %s105
    %p107 = scmp.eq.s32.totalorder %s18, 0
    %p108 = por %p106, %p107
    %s110 = sadd.s32 %s109, 1
    %p113 = scmp.eq.s32.totalorder %s12, 1
    %p114 = scmp.ne.s32.totalorder %s109, %s111
    %p115 = scmp.eq.s32.totalorder %s12, 0
    %p116 = por %p114, %p115
    %p117 = scmp.ne.s32.totalorder %s109, %s111
    %p118 = scmp.eq.s32.totalorder %s17, 1
    %p119 = por %p117, %p118
    %p120 = scmp.ne.s32.totalorder %s111, %s112
    %p121 = scmp.eq.s32.totalorder %s17, 0
    %p122 = por %p120, %p121
    %p123 = scmp.ne.s32.totalorder %s111, %s112
    %p124 = scmp.eq.s32.totalorder %s18, 1
    %p125 = por %p123, %p124
    %p127 = scmp.ne.s32.totalorder %s112, %s126
    %p128 = scmp.eq.s32.totalorder %s18, 0
    %p129 = por %p127, %p128
    %s131 = sadd.s32 %s130, 1
    %p134 = scmp.eq.s32.totalorder %s12, 1
    %p135 = scmp.ne.s32.totalorder %s130, %s132
    %p136 = scmp.eq.s32.totalorder %s12, 0
    %p137 = por %p135, %p136
    %p138 = scmp.ne.s32.totalorder %s130, %s132
    %p139 = scmp.eq.s32.totalorder %s17, 1
    %p140 = por %p138, %p139
    %p141 = scmp.ne.s32.totalorder %s132, %s133
    %p142 = scmp.eq.s32.totalorder %s17, 0
    %p143 = por %p141, %p142
    %p144 = scmp.ne.s32.totalorder %s132, %s133
    %p145 = scmp.eq.s32.totalorder %s18, 1
    %p146 = por %p144, %p145
    %p148 = scmp.ne.s32.totalorder %s133, %s147
    %p149 = scmp.eq.s32.totalorder %s18, 0
    %p150 = por %p148, %p149
    %s152 = sadd.s32 %s151, 1
    %p155 = scmp.eq.s32.totalorder %s12, 1
    %p156 = scmp.ne.s32.totalorder %s151, %s153
    %p157 = scmp.eq.s32.totalorder %s12, 0
    %p158 = por %p156, %p157
    %p159 = scmp.ne.s32.totalorder %s151, %s153
    %p160 = scmp.eq.s32.totalorder %s17, 1
    %p161 = por %p159, %p160
    %p162 = scmp.ne.s32.totalorder %s153, %s154
    %p163 = scmp.eq.s32.totalorder %s17, 0
    %p164 = por %p162, %p163
    %p165 = scmp.ne.s32.totalorder %s153, %s154
    %p166 = scmp.eq.s32.totalorder %s18, 1
    %p167 = por %p165, %p166
    %p169 = scmp.ne.s32.totalorder %s154, %s168
    %p170 = scmp.eq.s32.totalorder %s18, 0
    %p171 = por %p169, %p170
    %s172 = ssub.s32 %s20, %s27
    %s173 = ssub.s32 %s19, %s31
    %s174 = sor.u32 %s172, %s173
    %p175 = scmp.eq.s32.totalorder %s174, 0
    %s177 = sadd.s32 %s176, 1
    %s178 = scalar_select %p175, %s176, %s177
    %p181 = pneg %p175
    %p182 = scmp.eq.s32.totalorder %s12, 1
    %p183 = por %p181, %p182
    %p184 = scmp.ne.s32.totalorder %s176, %s179
    %p185 = scmp.eq.s32.totalorder %s12, 0
    %p186 = por %p184, %p185
    %p187 = scmp.ne.s32.totalorder %s176, %s179
    %p188 = scmp.eq.s32.totalorder %s17, 1
    %p189 = por %p187, %p188
    %p190 = scmp.ne.s32.totalorder %s179, %s180
    %p191 = scmp.eq.s32.totalorder %s17, 0
    %p192 = por %p190, %p191
    %p193 = scmp.ne.s32.totalorder %s179, %s180
    %p194 = scmp.eq.s32.totalorder %s18, 1
    %p195 = por %p193, %p194
    %p197 = scmp.ne.s32.totalorder %s180, %s196
    %p198 = scmp.eq.s32.totalorder %s18, 0
    %p199 = por %p197, %p198
    %p200 = scmp.le.s32.totalorder 1, %s12
    %p201 = scmp.lt.s32.totalorder %s12, 3
    %p202 = pnand %p200, %p201
    %p203 = pneg %p202
    // Predicated region
    $region9: #{unet_block_forward.5} parent=5 // pred_check
      _
    $region10: #{unet_block_forward.5} parent=5 // pred_check_branch
      %205 = sbr.rel (%p202) target = $region12
    $region11: #{unet_block_forward.5} parent=5 // pred_region
      %s206 = ssub.s32 %s12, 1
      // Predicated region
      $region13: #{unet_block_forward.5} parent=11 // pred_check
        %p207 = pneg %p101
      $region14: #{unet_block_forward.5} parent=11 // pred_check_branch
        %209 = sbr.rel (%p207) target = $region16
      $region15: #{unet_block_forward.5} parent=11 // pred_region
        _
      $region16: #{unet_block_forward.5} parent=11 // pred_fallthru
        _
      // Predicated region
      $region17: #{unet_block_forward.5} parent=11 // pred_check
        %p210 = pneg %p122
      $region18: #{unet_block_forward.5} parent=11 // pred_check_branch
        %212 = sbr.rel (%p210) target = $region20
      $region19: #{unet_block_forward.5} parent=11 // pred_region
        _
      $region20: #{unet_block_forward.5} parent=11 // pred_fallthru
        _
      // Predicated region
      $region21: #{unet_block_forward.5} parent=11 // pred_check
        %p213 = pneg %p143
      $region22: #{unet_block_forward.5} parent=11 // pred_check_branch
        %215 = sbr.rel (%p213) target = $region24
      $region23: #{unet_block_forward.5} parent=11 // pred_region
        _
      $region24: #{unet_block_forward.5} parent=11 // pred_fallthru
        _
      // Predicated region
      $region25: #{unet_block_forward.5} parent=11 // pred_check
        %p216 = pneg %p164
      $region26: #{unet_block_forward.5} parent=11 // pred_check_branch
        %218 = sbr.rel (%p216) target = $region28
      $region27: #{unet_block_forward.5} parent=11 // pred_region
        _
      $region28: #{unet_block_forward.5} parent=11 // pred_fallthru
        _
    $region12: #{unet_block_forward.5} parent=5 // pred_fallthru
      _
    %p219 = scmp.lt.s32.totalorder %s12, 2
    // Predicated region
    $region29: #{unet_block_forward.5} parent=5 // pred_check
      %p220 = pneg %p219
    $region30: #{unet_block_forward.5} parent=5 // pred_check_branch
      %222 = sbr.rel (%p220) target = $region32
    $region31: #{unet_block_forward.5} parent=5 // pred_region
      // Predicated region
      $region33: #{unet_block_forward.5} parent=31 // pred_check
        %p223 = pneg %p46
      $region34: #{unet_block_forward.5} parent=31 // pred_check_branch
        %225 = sbr.rel (%p223) target = $region36
      $region35: #{unet_block_forward.5} parent=31 // pred_region
        %s226 = smul.u32 32, %s19
        %p227 = scmp.lt.s32.totalorder %s20, 1
        %s228 = scalar_select %p227, %s20, 1
        %p229 = scmp.lt.s32.totalorder %s226, 31
        %s230 = scalar_select %p229, %s226, 31
        %s231 = smul.addr %s228, 32
        %s232 = sadd.s32 %s230, %s231
        %s233 = smul.addr %s232, 4
        %s234 = scalar_lea.vmem %s0, %s233
        %s235 = smul.u32 32, %s19
      $region36: #{unet_block_forward.5} parent=31 // pred_fallthru
        _
      // Predicated region
      $region37: #{unet_block_forward.5} parent=31 // pred_check
        %p236 = pneg %p74
      $region38: #{unet_block_forward.5} parent=31 // pred_check_branch
        %238 = sbr.rel (%p236) target = $region40
      $region39: #{unet_block_forward.5} parent=31 // pred_region
        %s239 = smul.u32 32, %s19
        %p240 = scmp.lt.s32.totalorder %s20, 1
        %s241 = scalar_select %p240, %s20, 1
        %p242 = scmp.lt.s32.totalorder %s239, 31
        %s243 = scalar_select %p242, %s239, 31
        %s244 = smul.addr %s241, 32
        %s245 = sadd.s32 %s243, %s244
        %s246 = smul.addr %s245, 4
        %s247 = scalar_lea.vmem %s1, %s246
        %s248 = smul.u32 32, %s19
      $region40: #{unet_block_forward.5} parent=31 // pred_fallthru
        _
    $region32: #{unet_block_forward.5} parent=5 // pred_fallthru
      _
    %p249 = scmp.le.s32.totalorder 1, %s12
    %p250 = scmp.lt.s32.totalorder %s12, 3
    %p251 = pnand %p249, %p250
    %p252 = pneg %p251
    // Predicated region
    $region41: #{unet_block_forward.5} parent=5 // pred_check
      _
    $region42: #{unet_block_forward.5} parent=5 // pred_check_branch
      %254 = sbr.rel (%p251) target = $region44
    $region43: #{unet_block_forward.5} parent=5 // pred_region
      %s255 = ssub.s32 %s12, 1
      %s256 = smul.u32 32, %s21
      %p257 = scmp.lt.s32.totalorder %s22, 1
      %s258 = scalar_select %p257, %s22, 1
      %p259 = scmp.lt.s32.totalorder %s256, 31
      %s260 = scalar_select %p259, %s256, 31
      %s261 = smul.addr %s258, 32
      %s262 = sadd.s32 %s260, %s261
      %s263 = smul.addr %s262, 4
      %s264 = scalar_lea.vmem %s0, %s263
      %p265 = pneg %p52
      %p266 = pneg %p49
      %s267 = smul.u32 32, %s21
      %p268 = scmp.lt.s32.totalorder %s22, 1
      %s269 = scalar_select %p268, %s22, 1
      %p270 = scmp.lt.s32.totalorder %s267, 31
      %s271 = scalar_select %p270, %s267, 31
      %s272 = smul.addr %s269, 32
      %s273 = sadd.s32 %s271, %s272
      %s274 = smul.addr %s273, 4
      %s275 = scalar_lea.vmem %s1, %s274
      %p276 = pneg %p80
      %p277 = pneg %p77
      %p278 = pneg %p101
      %p279 = pneg %p98
      %p280 = pneg %p122
      %p281 = pneg %p119
      %p282 = pneg %p143
      %p283 = pneg %p140
      %p284 = pneg %p164
      %p285 = pneg %p161
      %p286 = pneg %p192
      %p287 = pneg %p189
      %s288 = smul.u32 2, %s21
      %p289 = scmp.lt.s32.totalorder %s22, 1
      %s290 = scalar_select %p289, %s22, 1
      %p291 = scmp.lt.s32.totalorder %s288, 1
      %s292 = scalar_select %p291, %s288, 1
      %s293 = smul.addr %s290, 2
      %s294 = sadd.s32 %s292, %s293
      %s295 = smul.addr %s294, 8
      %s296 = scalar_lea.vmem %s6, %s295
      %s297 = smul.u32 32, %s21
      %p298 = scmp.lt.s32.totalorder %s22, 1
      %s299 = scalar_select %p298, %s22, 1
      %p300 = scmp.lt.s32.totalorder %s297, 31
      %s301 = scalar_select %p300, %s297, 31
      %s302 = smul.addr %s299, 32
      %s303 = sadd.s32 %s301, %s302
      %s304 = smul.addr %s303, 4
      %s305 = scalar_lea.vmem %s0, %s304
      %s306 = smul.u32 32, %s21
      %s307 = smul.u32 32, %s21
      %p308 = scmp.lt.s32.totalorder %s22, 1
      %s309 = scalar_select %p308, %s22, 1
      %p310 = scmp.lt.s32.totalorder %s307, 31
      %s311 = scalar_select %p310, %s307, 31
      %s312 = smul.addr %s309, 32
      %s313 = sadd.s32 %s311, %s312
      %s314 = smul.addr %s313, 4
      %s315 = scalar_lea.vmem %s1, %s314
      %s316 = smul.u32 32, %s21
      %s317 = smul.u32 2, %s21
      %p318 = scmp.lt.s32.totalorder %s22, 1
      %s319 = scalar_select %p318, %s22, 1
      %p320 = scmp.lt.s32.totalorder %s317, 1
      %s321 = scalar_select %p320, %s317, 1
      %s322 = smul.addr %s319, 2
      %s323 = sadd.s32 %s321, %s322
      %s324 = smul.addr %s323, 8
      %s325 = scalar_lea.vmem %s6, %s324
      %s326 = smul.u32 2, %s21
      %v327 = vld [vmem:[%s305] sm:$0xf]
      %v328 = vld [vmem:[%s305 + $0x4] sm:$0xf]
      %v329 = vld [vmem:[%s305 + $0x8] sm:$0xf]
      %v330 = vld [vmem:[%s305 + $0xc] sm:$0xf]
      %v331 = vld [vmem:[%s305 + $0x10] sm:$0xf]
      %v332 = vld [vmem:[%s305 + $0x14] sm:$0xf]
      %v333 = vld [vmem:[%s305 + $0x18] sm:$0xf]
      %v334 = vld [vmem:[%s305 + $0x1c] sm:$0xf]
      %v335 = vld [vmem:[%s305 + $0x20] sm:$0xf]
      %v336 = vld [vmem:[%s305 + $0x24] sm:$0xf]
      %v337 = vld [vmem:[%s305 + $0x28] sm:$0xf]
      %v338 = vld [vmem:[%s305 + $0x2c] sm:$0xf]
      %v339 = vld [vmem:[%s305 + $0x30] sm:$0xf]
      %v340 = vld [vmem:[%s305 + $0x34] sm:$0xf]
      %v341 = vld [vmem:[%s305 + $0x38] sm:$0xf]
      %v342 = vld [vmem:[%s305 + $0x3c] sm:$0xf]
      %v343 = vld [vmem:[%s305 + $0x40] sm:$0xf]
      %v344 = vld [vmem:[%s305 + $0x44] sm:$0xf]
      %v345 = vld [vmem:[%s305 + $0x48] sm:$0xf]
      %v346 = vld [vmem:[%s305 + $0x4c] sm:$0xf]
      %v347 = vld [vmem:[%s305 + $0x50] sm:$0xf]
      %v348 = vld [vmem:[%s305 + $0x54] sm:$0xf]
      %v349 = vld [vmem:[%s305 + $0x58] sm:$0xf]
      %v350 = vld [vmem:[%s305 + $0x5c] sm:$0xf]
      %v351 = vld [vmem:[%s305 + $0x60] sm:$0xf]
      %v352 = vld [vmem:[%s305 + $0x64] sm:$0xf]
      %v353 = vld [vmem:[%s305 + $0x68] sm:$0xf]
      %v354 = vld [vmem:[%s305 + $0x6c] sm:$0xf]
      %v355 = vld [vmem:[%s305 + $0x70] sm:$0xf]
      %v356 = vld [vmem:[%s305 + $0x74] sm:$0xf]
      %v357 = vld [vmem:[%s305 + $0x78] sm:$0xf]
      %v358 = vld [vmem:[%s305 + $0x7c] sm:$0xf]
      %v359 = vunpack.c.l.bf16 %v327
      %v360 = vunpack.c.l.bf16 %v328
      %v361 = vunpack.c.l.bf16 %v329
      %v362 = vunpack.c.l.bf16 %v330
      %v363 = vunpack.c.l.bf16 %v331
      %v364 = vunpack.c.l.bf16 %v332
      %v365 = vunpack.c.l.bf16 %v333
      %v366 = vunpack.c.l.bf16 %v334
      %v367 = vunpack.c.l.bf16 %v335
      %v368 = vunpack.c.l.bf16 %v336
      %v369 = vunpack.c.l.bf16 %v337
      %v370 = vunpack.c.l.bf16 %v338
      %v371 = vunpack.c.l.bf16 %v339
      %v372 = vunpack.c.l.bf16 %v340
      %v373 = vunpack.c.l.bf16 %v341
      %v374 = vunpack.c.l.bf16 %v342
      %v375 = vunpack.c.l.bf16 %v343
      %v376 = vunpack.c.l.bf16 %v344
      %v377 = vunpack.c.l.bf16 %v345
      %v378 = vunpack.c.l.bf16 %v346
      %v379 = vunpack.c.l.bf16 %v347
      %v380 = vunpack.c.l.bf16 %v348
      %v381 = vunpack.c.l.bf16 %v349
      %v382 = vunpack.c.l.bf16 %v350
      %v383 = vunpack.c.l.bf16 %v351
      %v384 = vunpack.c.l.bf16 %v352
      %v385 = vunpack.c.l.bf16 %v353
      %v386 = vunpack.c.l.bf16 %v354
      %v387 = vunpack.c.l.bf16 %v355
      %v388 = vunpack.c.l.bf16 %v356
      %v389 = vunpack.c.l.bf16 %v357
      %v390 = vunpack.c.l.bf16 %v358
      %v391 = vld [vmem:[%s2] sm:$0x1]
      %v393 = vlaneseq
      %v394 = vshrl.u32 %v393, 7
      %v395 = vsub.s32 0, %v394
      %v396 = vrot.slane %v391, %v395
      %v398 = vmul.f32 %v359, %v396
      %v399 = vmul.f32 %v360, %v396
      %v400 = vmul.f32 %v361, %v396
      %v401 = vmul.f32 %v362, %v396
      %v402 = vmul.f32 %v363, %v396
      %v403 = vmul.f32 %v364, %v396
      %v404 = vmul.f32 %v365, %v396
      %v405 = vmul.f32 %v366, %v396
      %v406 = vmul.f32 %v367, %v396
      %v407 = vmul.f32 %v368, %v396
      %v408 = vmul.f32 %v369, %v396
      %v409 = vmul.f32 %v370, %v396
      %v410 = vmul.f32 %v371, %v396
      %v411 = vmul.f32 %v372, %v396
      %v412 = vmul.f32 %v373, %v396
      %v413 = vmul.f32 %v374, %v396
      %v414 = vmul.f32 %v375, %v396
      %v415 = vmul.f32 %v376, %v396
      %v416 = vmul.f32 %v377, %v396
      %v417 = vmul.f32 %v378, %v396
      %v418 = vmul.f32 %v379, %v396
      %v419 = vmul.f32 %v380, %v396
      %v420 = vmul.f32 %v381, %v396
      %v421 = vmul.f32 %v382, %v396
      %v422 = vmul.f32 %v383, %v396
      %v423 = vmul.f32 %v384, %v396
      %v424 = vmul.f32 %v385, %v396
      %v425 = vmul.f32 %v386, %v396
      %v426 = vmul.f32 %v387, %v396
      %v427 = vmul.f32 %v388, %v396
      %v428 = vmul.f32 %v389, %v396
      %v429 = vmul.f32 %v390, %v396
      %v430 = vld [vmem:[%s3] sm:$0x1]
      %v432 = vlaneseq
      %v433 = vshrl.u32 %v432, 7
      %v434 = vsub.s32 0, %v433
      %v435 = vrot.slane %v430, %v434
      %v437 = vadd.f32 %v398, %v435
      %v438 = vadd.f32 %v399, %v435
      %v439 = vadd.f32 %v400, %v435
      %v440 = vadd.f32 %v401, %v435
      %v441 = vadd.f32 %v402, %v435
      %v442 = vadd.f32 %v403, %v435
      %v443 = vadd.f32 %v404, %v435
      %v444 = vadd.f32 %v405, %v435
      %v445 = vadd.f32 %v406, %v435
      %v446 = vadd.f32 %v407, %v435
      %v447 = vadd.f32 %v408, %v435
      %v448 = vadd.f32 %v409, %v435
      %v449 = vadd.f32 %v410, %v435
      %v450 = vadd.f32 %v411, %v435
      %v451 = vadd.f32 %v412, %v435
      %v452 = vadd.f32 %v413, %v435
      %v453 = vadd.f32 %v414, %v435
      %v454 = vadd.f32 %v415, %v435
      %v455 = vadd.f32 %v416, %v435
      %v456 = vadd.f32 %v417, %v435
      %v457 = vadd.f32 %v418, %v435
      %v458 = vadd.f32 %v419, %v435
      %v459 = vadd.f32 %v420, %v435
      %v460 = vadd.f32 %v421, %v435
      %v461 = vadd.f32 %v422, %v435
      %v462 = vadd.f32 %v423, %v435
      %v463 = vadd.f32 %v424, %v435
      %v464 = vadd.f32 %v425, %v435
      %v465 = vadd.f32 %v426, %v435
      %v466 = vadd.f32 %v427, %v435
      %v467 = vadd.f32 %v428, %v435
      %v468 = vadd.f32 %v429, %v435
      %469 = vxpose.xlu0.b32.start [1/16] %v437, 128
      %470 = vxpose.xlu0.b32.cont [2/16] %v438, 128
      %471 = vxpose.xlu0.b32.cont [3/16] %v439, 128
      %472 = vxpose.xlu0.b32.cont [4/16] %v440, 128
      %473 = vxpose.xlu0.b32.cont [5/16] %v441, 128
      %474 = vxpose.xlu0.b32.cont [6/16] %v442, 128
      %475 = vxpose.xlu0.b32.cont [7/16] %v443, 128
      %476 = vxpose.xlu0.b32.cont [8/16] %v444, 128
      %477 = vxpose.xlu0.b32.cont [9/16] %v445, 128
      %478 = vxpose.xlu0.b32.cont [10/16] %v446, 128
      %479 = vxpose.xlu0.b32.cont [11/16] %v447, 128
      %480 = vxpose.xlu0.b32.cont [12/16] %v448, 128
      %481 = vxpose.xlu0.b32.cont [13/16] %v449, 128
      %482 = vxpose.xlu0.b32.cont [14/16] %v450, 128
      %483 = vxpose.xlu0.b32.cont [15/16] %v451, 128
      %484 = vxpose.xlu0.b32.end [16/16] %v452, 128
      %v485 = vpop.trf.xlu0
      %v486 = vpop.trf.xlu0
      %v487 = vpop.trf.xlu0
      %v488 = vpop.trf.xlu0
      %v489 = vpop.trf.xlu0
      %v490 = vpop.trf.xlu0
      %v491 = vpop.trf.xlu0
      %v492 = vpop.trf.xlu0
      %v493 = vpop.trf.xlu0
      %v494 = vpop.trf.xlu0
      %v495 = vpop.trf.xlu0
      %v496 = vpop.trf.xlu0
      %v497 = vpop.trf.xlu0
      %v498 = vpop.trf.xlu0
      %v499 = vpop.trf.xlu0
      %v500 = vpop.trf.xlu0
      %501 = vxpose.xlu0.b32.start [1/16] %v453, 128
      %502 = vxpose.xlu0.b32.cont [2/16] %v454, 128
      %503 = vxpose.xlu0.b32.cont [3/16] %v455, 128
      %504 = vxpose.xlu0.b32.cont [4/16] %v456, 128
      %505 = vxpose.xlu0.b32.cont [5/16] %v457, 128
      %506 = vxpose.xlu0.b32.cont [6/16] %v458, 128
      %507 = vxpose.xlu0.b32.cont [7/16] %v459, 128
      %508 = vxpose.xlu0.b32.cont [8/16] %v460, 128
      %509 = vxpose.xlu0.b32.cont [9/16] %v461, 128
      %510 = vxpose.xlu0.b32.cont [10/16] %v462, 128
      %511 = vxpose.xlu0.b32.cont [11/16] %v463, 128
      %512 = vxpose.xlu0.b32.cont [12/16] %v464, 128
      %513 = vxpose.xlu0.b32.cont [13/16] %v465, 128
      %514 = vxpose.xlu0.b32.cont [14/16] %v466, 128
      %515 = vxpose.xlu0.b32.cont [15/16] %v467, 128
      %516 = vxpose.xlu0.b32.end [16/16] %v468, 128
      %v517 = vpop.trf.xlu0
      %v518 = vpop.trf.xlu0
      %v519 = vpop.trf.xlu0
      %v520 = vpop.trf.xlu0
      %v521 = vpop.trf.xlu0
      %v522 = vpop.trf.xlu0
      %v523 = vpop.trf.xlu0
      %v524 = vpop.trf.xlu0
      %v525 = vpop.trf.xlu0
      %v526 = vpop.trf.xlu0
      %v527 = vpop.trf.xlu0
      %v528 = vpop.trf.xlu0
      %v529 = vpop.trf.xlu0
      %v530 = vpop.trf.xlu0
      %v531 = vpop.trf.xlu0
      %v532 = vpop.trf.xlu0
      %533 = vst [vmem:[%s325] sm:$0xf] %v485
      %534 = vst [vmem:[%s325 + $0x8] sm:$0xf] %v517
      %v535 = vld [vmem:[%s315] sm:$0xf]
      %v536 = vld [vmem:[%s315 + $0x4] sm:$0xf]
      %v537 = vld [vmem:[%s315 + $0x8] sm:$0xf]
      %v538 = vld [vmem:[%s315 + $0xc] sm:$0xf]
      %v539 = vld [vmem:[%s315 + $0x10] sm:$0xf]
      %v540 = vld [vmem:[%s315 + $0x14] sm:$0xf]
      %v541 = vld [vmem:[%s315 + $0x18] sm:$0xf]
      %v542 = vld [vmem:[%s315 + $0x1c] sm:$0xf]
      %v543 = vld [vmem:[%s315 + $0x20] sm:$0xf]
      %v544 = vld [vmem:[%s315 + $0x24] sm:$0xf]
      %v545 = vld [vmem:[%s315 + $0x28] sm:$0xf]
      %v546 = vld [vmem:[%s315 + $0x2c] sm:$0xf]
      %v547 = vld [vmem:[%s315 + $0x30] sm:$0xf]
      %v548 = vld [vmem:[%s315 + $0x34] sm:$0xf]
      %v549 = vld [vmem:[%s315 + $0x38] sm:$0xf]
      %v550 = vld [vmem:[%s315 + $0x3c] sm:$0xf]
      %v551 = vld [vmem:[%s315 + $0x40] sm:$0xf]
      %v552 = vld [vmem:[%s315 + $0x44] sm:$0xf]
      %v553 = vld [vmem:[%s315 + $0x48] sm:$0xf]
      %v554 = vld [vmem:[%s315 + $0x4c] sm:$0xf]
      %v555 = vld [vmem:[%s315 + $0x50] sm:$0xf]
      %v556 = vld [vmem:[%s315 + $0x54] sm:$0xf]
      %v557 = vld [vmem:[%s315 + $0x58] sm:$0xf]
      %v558 = vld [vmem:[%s315 + $0x5c] sm:$0xf]
      %v559 = vld [vmem:[%s315 + $0x60] sm:$0xf]
      %v560 = vld [vmem:[%s315 + $0x64] sm:$0xf]
      %v561 = vld [vmem:[%s315 + $0x68] sm:$0xf]
      %v562 = vld [vmem:[%s315 + $0x6c] sm:$0xf]
      %v563 = vld [vmem:[%s315 + $0x70] sm:$0xf]
      %v564 = vld [vmem:[%s315 + $0x74] sm:$0xf]
      %v565 = vld [vmem:[%s315 + $0x78] sm:$0xf]
      %v566 = vld [vmem:[%s315 + $0x7c] sm:$0xf]
      %v567 = vunpack.c.l.bf16 %v535
      %v568 = vunpack.c.l.bf16 %v536
      %v569 = vunpack.c.l.bf16 %v537
      %v570 = vunpack.c.l.bf16 %v538
      %v571 = vunpack.c.l.bf16 %v539
      %v572 = vunpack.c.l.bf16 %v540
      %v573 = vunpack.c.l.bf16 %v541
      %v574 = vunpack.c.l.bf16 %v542
      %v575 = vunpack.c.l.bf16 %v543
      %v576 = vunpack.c.l.bf16 %v544
      %v577 = vunpack.c.l.bf16 %v545
      %v578 = vunpack.c.l.bf16 %v546
      %v579 = vunpack.c.l.bf16 %v547
      %v580 = vunpack.c.l.bf16 %v548
      %v581 = vunpack.c.l.bf16 %v549
      %v582 = vunpack.c.l.bf16 %v550
      %v583 = vunpack.c.l.bf16 %v551
      %v584 = vunpack.c.l.bf16 %v552
      %v585 = vunpack.c.l.bf16 %v553
      %v586 = vunpack.c.l.bf16 %v554
      %v587 = vunpack.c.l.bf16 %v555
      %v588 = vunpack.c.l.bf16 %v556
      %v589 = vunpack.c.l.bf16 %v557
      %v590 = vunpack.c.l.bf16 %v558
      %v591 = vunpack.c.l.bf16 %v559
      %v592 = vunpack.c.l.bf16 %v560
      %v593 = vunpack.c.l.bf16 %v561
      %v594 = vunpack.c.l.bf16 %v562
      %v595 = vunpack.c.l.bf16 %v563
      %v596 = vunpack.c.l.bf16 %v564
      %v597 = vunpack.c.l.bf16 %v565
      %v598 = vunpack.c.l.bf16 %v566
      %v599 = vld [vmem:[%s4] sm:$0x1]
      %v601 = vlaneseq
      %v602 = vshrl.u32 %v601, 7
      %v603 = vsub.s32 0, %v602
      %v604 = vrot.slane %v599, %v603
      %v606 = vmul.f32 %v567, %v604
      %v607 = vmul.f32 %v568, %v604
      %v608 = vmul.f32 %v569, %v604
      %v609 = vmul.f32 %v570, %v604
      %v610 = vmul.f32 %v571, %v604
      %v611 = vmul.f32 %v572, %v604
      %v612 = vmul.f32 %v573, %v604
      %v613 = vmul.f32 %v574, %v604
      %v614 = vmul.f32 %v575, %v604
      %v615 = vmul.f32 %v576, %v604
      %v616 = vmul.f32 %v577, %v604
      %v617 = vmul.f32 %v578, %v604
      %v618 = vmul.f32 %v579, %v604
      %v619 = vmul.f32 %v580, %v604
      %v620 = vmul.f32 %v581, %v604
      %v621 = vmul.f32 %v582, %v604
      %v622 = vmul.f32 %v583, %v604
      %v623 = vmul.f32 %v584, %v604
      %v624 = vmul.f32 %v585, %v604
      %v625 = vmul.f32 %v586, %v604
      %v626 = vmul.f32 %v587, %v604
      %v627 = vmul.f32 %v588, %v604
      %v628 = vmul.f32 %v589, %v604
      %v629 = vmul.f32 %v590, %v604
      %v630 = vmul.f32 %v591, %v604
      %v631 = vmul.f32 %v592, %v604
      %v632 = vmul.f32 %v593, %v604
      %v633 = vmul.f32 %v594, %v604
      %v634 = vmul.f32 %v595, %v604
      %v635 = vmul.f32 %v596, %v604
      %v636 = vmul.f32 %v597, %v604
      %v637 = vmul.f32 %v598, %v604
      %v638 = vld [vmem:[%s5] sm:$0x1]
      %v640 = vlaneseq
      %v641 = vshrl.u32 %v640, 7
      %v642 = vsub.s32 0, %v641
      %v643 = vrot.slane %v638, %v642
      %v645 = vadd.f32 %v606, %v643
      %v646 = vadd.f32 %v607, %v643
      %v647 = vadd.f32 %v608, %v643
      %v648 = vadd.f32 %v609, %v643
      %v649 = vadd.f32 %v610, %v643
      %v650 = vadd.f32 %v611, %v643
      %v651 = vadd.f32 %v612, %v643
      %v652 = vadd.f32 %v613, %v643
      %v653 = vadd.f32 %v614, %v643
      %v654 = vadd.f32 %v615, %v643
      %v655 = vadd.f32 %v616, %v643
      %v656 = vadd.f32 %v617, %v643
      %v657 = vadd.f32 %v618, %v643
      %v658 = vadd.f32 %v619, %v643
      %v659 = vadd.f32 %v620, %v643
      %v660 = vadd.f32 %v621, %v643
      %v661 = vadd.f32 %v622, %v643
      %v662 = vadd.f32 %v623, %v643
      %v663 = vadd.f32 %v624, %v643
      %v664 = vadd.f32 %v625, %v643
      %v665 = vadd.f32 %v626, %v643
      %v666 = vadd.f32 %v627, %v643
      %v667 = vadd.f32 %v628, %v643
      %v668 = vadd.f32 %v629, %v643
      %v669 = vadd.f32 %v630, %v643
      %v670 = vadd.f32 %v631, %v643
      %v671 = vadd.f32 %v632, %v643
      %v672 = vadd.f32 %v633, %v643
      %v673 = vadd.f32 %v634, %v643
      %v674 = vadd.f32 %v635, %v643
      %v675 = vadd.f32 %v636, %v643
      %v676 = vadd.f32 %v637, %v643
      %677 = vxpose.xlu0.b32.start [1/16] %v645, 128
      %678 = vxpose.xlu0.b32.cont [2/16] %v646, 128
      %679 = vxpose.xlu0.b32.cont [3/16] %v647, 128
      %680 = vxpose.xlu0.b32.cont [4/16] %v648, 128
      %681 = vxpose.xlu0.b32.cont [5/16] %v649, 128
      %682 = vxpose.xlu0.b32.cont [6/16] %v650, 128
      %683 = vxpose.xlu0.b32.cont [7/16] %v651, 128
      %684 = vxpose.xlu0.b32.cont [8/16] %v652, 128
      %685 = vxpose.xlu0.b32.cont [9/16] %v653, 128
      %686 = vxpose.xlu0.b32.cont [10/16] %v654, 128
      %687 = vxpose.xlu0.b32.cont [11/16] %v655, 128
      %688 = vxpose.xlu0.b32.cont [12/16] %v656, 128
      %689 = vxpose.xlu0.b32.cont [13/16] %v657, 128
      %690 = vxpose.xlu0.b32.cont [14/16] %v658, 128
      %691 = vxpose.xlu0.b32.cont [15/16] %v659, 128
      %692 = vxpose.xlu0.b32.end [16/16] %v660, 128
      %v693 = vpop.trf.xlu0
      %v694 = vpop.trf.xlu0
      %v695 = vpop.trf.xlu0
      %v696 = vpop.trf.xlu0
      %v697 = vpop.trf.xlu0
      %v698 = vpop.trf.xlu0
      %v699 = vpop.trf.xlu0
      %v700 = vpop.trf.xlu0
      %v701 = vpop.trf.xlu0
      %v702 = vpop.trf.xlu0
      %v703 = vpop.trf.xlu0
      %v704 = vpop.trf.xlu0
      %v705 = vpop.trf.xlu0
      %v706 = vpop.trf.xlu0
      %v707 = vpop.trf.xlu0
      %v708 = vpop.trf.xlu0
      %709 = vxpose.xlu0.b32.start [1/16] %v661, 128
      %710 = vxpose.xlu0.b32.cont [2/16] %v662, 128
      %711 = vxpose.xlu0.b32.cont [3/16] %v663, 128
      %712 = vxpose.xlu0.b32.cont [4/16] %v664, 128
      %713 = vxpose.xlu0.b32.cont [5/16] %v665, 128
      %714 = vxpose.xlu0.b32.cont [6/16] %v666, 128
      %715 = vxpose.xlu0.b32.cont [7/16] %v667, 128
      %716 = vxpose.xlu0.b32.cont [8/16] %v668, 128
      %717 = vxpose.xlu0.b32.cont [9/16] %v669, 128
      %718 = vxpose.xlu0.b32.cont [10/16] %v670, 128
      %719 = vxpose.xlu0.b32.cont [11/16] %v671, 128
      %720 = vxpose.xlu0.b32.cont [12/16] %v672, 128
      %721 = vxpose.xlu0.b32.cont [13/16] %v673, 128
      %722 = vxpose.xlu0.b32.cont [14/16] %v674, 128
      %723 = vxpose.xlu0.b32.cont [15/16] %v675, 128
      %724 = vxpose.xlu0.b32.end [16/16] %v676, 128
      %v725 = vpop.trf.xlu0
      %v726 = vpop.trf.xlu0
      %v727 = vpop.trf.xlu0
      %v728 = vpop.trf.xlu0
      %v729 = vpop.trf.xlu0
      %v730 = vpop.trf.xlu0
      %v731 = vpop.trf.xlu0
      %v732 = vpop.trf.xlu0
      %v733 = vpop.trf.xlu0
      %v734 = vpop.trf.xlu0
      %v735 = vpop.trf.xlu0
      %v736 = vpop.trf.xlu0
      %v737 = vpop.trf.xlu0
      %v738 = vpop.trf.xlu0
      %v739 = vpop.trf.xlu0
      %v740 = vpop.trf.xlu0
      %v743 = vrot.slane %v693, 4
      %v744 = vrot.slane %v725, 4
      %747 = vst [vmem:[%s325] sm:$0xf0] %v743
      %748 = vst [vmem:[%s325 + $0x8] sm:$0xf0] %v744
      %s749 = smul.u32 2, %s21
      %p750 = scmp.lt.s32.totalorder %s22, 1
      %s751 = scalar_select %p750, %s22, 1
      %p752 = scmp.lt.s32.totalorder %s749, 1
      %s753 = scalar_select %p752, %s749, 1
      %s754 = smul.addr %s751, 2
      %s755 = sadd.s32 %s753, %s754
      %s756 = smul.addr %s755, 8
      %s757 = scalar_lea.vmem %s6, %s756
      // Predicated region
      $region45: #{unet_block_forward.5} parent=43 // pred_check
        %p758 = pneg %p189
      $region46: #{unet_block_forward.5} parent=43 // pred_check_branch
        %760 = sbr.rel (%p758) target = $region48
      $region47: #{unet_block_forward.5} parent=43 // pred_region
        %s761 = smul.u32 2, %s21
      $region48: #{unet_block_forward.5} parent=43 // pred_fallthru
        _
    $region44: #{unet_block_forward.5} parent=5 // pred_fallthru
      _
    %p762 = scmp.le.s32.totalorder 2, %s12
    // Predicated region
    $region49: #{unet_block_forward.5} parent=5 // pred_check
      %p763 = pneg %p762
    $region50: #{unet_block_forward.5} parent=5 // pred_check_branch
      %765 = sbr.rel (%p763) target = $region52
    $region51: #{unet_block_forward.5} parent=5 // pred_region
      %s766 = ssub.s32 %s12, 2
      // Predicated region
      $region53: #{unet_block_forward.5} parent=51 // pred_check
        %p767 = pneg %p195
      $region54: #{unet_block_forward.5} parent=51 // pred_check_branch
        %769 = sbr.rel (%p767) target = $region56
      $region55: #{unet_block_forward.5} parent=51 // pred_region
        %s770 = smul.u32 2, %s23
        %p771 = scmp.lt.s32.totalorder %s24, 1
        %s772 = scalar_select %p771, %s24, 1
        %p773 = scmp.lt.s32.totalorder %s770, 1
        %s774 = scalar_select %p773, %s770, 1
        %s775 = smul.addr %s772, 2
        %s776 = sadd.s32 %s774, %s775
        %s777 = smul.addr %s776, 8
        %s778 = scalar_lea.vmem %s6, %s777
      $region56: #{unet_block_forward.5} parent=51 // pred_fallthru
        _
    $region52: #{unet_block_forward.5} parent=5 // pred_fallthru
      _
  $region6: #{unet_block_forward.5} parent=0 // loop_footer
    %s16 = sadd.s32 1, %s12
  $region7: #{unet_block_forward.5} parent=0 // loop_footer_branch
    %11 = sbr.rel target = $region3
  $region8: #{unet_block_forward.5} parent=0 // loop_exit
    _

</llo_original>
